<compile_context>
chip_gen: v7x
topology: tpu7x:2x2x1
jax: 0.10.0
libtpu: 0.0.40
codegen_flags: <defaults>
</compile_context>

<pallas_src>
import functools
import math

import jax
import jax.numpy as jnp
from jax.experimental import pallas as pl
from jax.experimental.pallas import tpu as pltpu


def _dot_t(a, b):
    """(M, K) x (N, K) -> (M, N): contract last dims on the MXU, f32 accumulate."""
    return jax.lax.dot_general(
        a, b, (((1,), (1,)), ((), ())), preferred_element_type=jnp.float32)


def mhda_kernel(x_ref, wqkv_ref, wo_ref, o_ref, *, n_heads, d_k, d_v):
    # x_ref:    (1, S, D)              input rows for batch b
    # wqkv_ref: (H*(2*DK+DV), D)       fused [W_Q | W_K | W_V], (out, in) layout
    # wo_ref:   (D, H*DV)              W_O, (out, in) layout
    # o_ref:    (1, S, D)              output rows for batch b
    x = x_ref[0]                                   # (S, D)
    S, D = x.shape

    # One fused, lane-dense QKV projection: (S, D) x (H*(2DK+DV), D)^T.
    qkv = _dot_t(x, wqkv_ref[...])                 # (S, H*(2*DK+DV)) f32

    # Spec quirk: d_k = x.shape[-1] (= d_model).  Fold the scale into q:
    # O(S*DK) VPU multiplies instead of O(S^2) on the score matrix.
    scale = 1.0 / math.sqrt(D)

    # Causal mask indices (shared across all heads).
    row = jax.lax.broadcasted_iota(jnp.int32, (S, S), 0)
    col = jax.lax.broadcasted_iota(jnp.int32, (S, S), 1)
    causal = col > row

    k_off = n_heads * d_k
    v_off = 2 * n_heads * d_k

    out = jnp.zeros((S, D), jnp.float32)           # vreg accumulator over heads
    for h in range(n_heads):                       # H static & small -> unrolled
        q = qkv[:, h * d_k:(h + 1) * d_k] * scale               # (S, DK)
        k = qkv[:, k_off + h * d_k:k_off + (h + 1) * d_k]       # (S, DK)
        v = qkv[:, v_off + h * d_v:v_off + (h + 1) * d_v]       # (S, DV)

        a = _dot_t(q, k)                                        # (S, S)
        a = jnp.where(causal, -jnp.inf, a)

        # Stable softmax with deferred normalization: normalize the (S, DV)
        # head output instead of the (S, S) probabilities; 1/l goes to the EUP.
        m = jnp.max(a, axis=-1, keepdims=True)
        p = jnp.exp(a - m)
        l = jnp.sum(p, axis=-1, keepdims=True)
        ho = jnp.dot(p, v, preferred_element_type=jnp.float32)  # (S, DV), unnorm.
        ho = ho * pl.reciprocal(l, approx=True)

        # This head's slice of the output projection, contracted in the
        # PyTorch (out, in) layout: (S, DV) x (D, DV)^T -> (S, D).  Summing
        # over heads equals concat-then-W_O; accumulation stays in vregs.
        wo_h = wo_ref[:, h * d_v:(h + 1) * d_v]                 # (D, DV)
        out = out + _dot_t(ho, wo_h)

    o_ref[0] = out.astype(o_ref.dtype)


def mhda_forward(x, wq, wk, wv, wo):
    """x: (B, S, D); wq/wk: (H, DK, D); wv: (H, DV, D); wo: (D, H*DV)."""
    B, S, D = x.shape
    H, DK, _ = wq.shape
    DV = wv.shape[1]

    # Fuse the per-head projection weights once in the wrapper, keeping the
    # PyTorch (out, in) layout: (H*(2*DK+DV), D).  Contracted on the last dim
    # inside the kernel, so no transposes anywhere.
    w_qkv = jnp.concatenate(
        [wq.reshape(H * DK, D), wk.reshape(H * DK, D), wv.reshape(H * DV, D)],
        axis=0)

    itemsize = jnp.dtype(x.dtype).itemsize
    flops = 2 * (B * S * D * H * (2 * DK + DV)     # fused QKV projection
                 + B * H * S * S * (DK + DV)       # scores + P@V
                 + B * H * S * DV * D)             # output projection
    cost = pl.CostEstimate(
        flops=int(flops),
        transcendentals=int(B * H * S * (S + 1)),  # exp + per-row reciprocal
        bytes_accessed=int(itemsize * (x.size + w_qkv.size + wo.size
                                       + B * S * D)))  # weights read once

    kernel = functools.partial(mhda_kernel, n_heads=H, d_k=DK, d_v=DV)

    return pl.pallas_call(
        kernel,
        out_shape=jax.ShapeDtypeStruct((B, S, D), x.dtype),
        grid_spec=pltpu.PrefetchScalarGridSpec(
            num_scalar_prefetch=0,
            grid=(B,),
            in_specs=[
                pl.BlockSpec((1, S, D), lambda b: (b, 0, 0)),   # x row-slab
                pl.BlockSpec(w_qkv.shape, lambda b: (0, 0)),    # resident W_QKV
                pl.BlockSpec(wo.shape, lambda b: (0, 0)),       # resident W_O
            ],
            out_specs=pl.BlockSpec((1, S, D), lambda b: (b, 0, 0)),
        ),
        compiler_params=pltpu.CompilerParams(
            dimension_semantics=("parallel",)),                 # megacore on v7x
        cost_estimate=cost,
    )(x, w_qkv, wo)


def mhda_reference(x, wq, wk, wv, wo):
    """Pure-JAX reference mirroring MultiHeadDecoderAttention.forward."""
    B, S, D = x.shape
    q = jnp.einsum("bsd,hkd->bhsk", x, wq)
    k = jnp.einsum("bsd,hkd->bhsk", x, wk)
    v = jnp.einsum("bsd,hvd->bhsv", x, wv)
    a = jnp.einsum("bhsk,bhtk->bhst", q, k) / jnp.sqrt(jnp.float32(D))
    row = jnp.arange(S)[:, None]
    col = jnp.arange(S)[None, :]
    a = jnp.where(col > row, -jnp.inf, a)
    p = jax.nn.softmax(a, axis=-1)
    ho = jnp.einsum("bhst,bhtv->bhsv", p, v)          # (B, H, S, DV)
    cat = jnp.transpose(ho, (0, 2, 1, 3)).reshape(B, S, -1)
    return cat @ wo.T


if __name__ == "__main__":
    batch, seq, d_model, d_k, d_v, n_heads = 2, 16, 128, 32, 32, 4

    key = jax.random.PRNGKey(0)
    kx, kq, kk, kv, ko = jax.random.split(key, 5)

    x = jax.random.normal(kx, (batch, seq, d_model), dtype=jnp.float32)

    # nn.Linear(d_model, d_k, bias=False): weight (out, in), U(-1/sqrt(in), 1/sqrt(in))
    bound_in = 1.0 / math.sqrt(d_model)
    wq = jax.random.uniform(kq, (n_heads, d_k, d_model), jnp.float32, -bound_in, bound_in)
    wk = jax.random.uniform(kk, (n_heads, d_k, d_model), jnp.float32, -bound_in, bound_in)
    wv = jax.random.uniform(kv, (n_heads, d_v, d_model), jnp.float32, -bound_in, bound_in)
    bound_o = 1.0 / math.sqrt(n_heads * d_v)
    wo = jax.random.uniform(ko, (d_model, n_heads * d_v), jnp.float32, -bound_o, bound_o)

    out = mhda_forward(x, wq, wk, wv, wo)
    out = jax.block_until_ready(out)

    ref = mhda_reference(x, wq, wk, wv, wo)
    assert out.shape == (batch, seq, d_model)
    # Tolerance loosened slightly (1e-3) because the softmax denominator uses
    # the EUP approximate reciprocal per the perf review.
    assert jnp.allclose(out, ref, atol=1e-3, rtol=1e-3), "mismatch vs JAX reference"

    print("KERNEL_OK")
</pallas_src>

<mosaic_0001>
module attributes {stable_mosaic.version = 11 : i64} {
  func.func @mhda_kernel(%arg0: i32, %arg1: memref<1x16x128xf32, #tpu.memory_space<vmem>>, %arg2: memref<384x128xf32, #tpu.memory_space<vmem>>, %arg3: memref<128x128xf32, #tpu.memory_space<vmem>>, %arg4: memref<1x16x128xf32, #tpu.memory_space<vmem>>) attributes {dimension_semantics = [#tpu.dimension_semantics<parallel>], iteration_bounds = array<i64: 2>, scalar_prefetch = 0 : i64, scratch_operands = 0 : i64, tpu.core_type = #tpu.core_type<tc>, window_params = [{transform_indices = @transform_0, window_bounds = array<i64: 1, 16, 128>}, {pipeline_mode = #tpu.pipeline_mode<synchronous>, transform_indices = @transform_1, window_bounds = array<i64: 384, 128>}, {pipeline_mode = #tpu.pipeline_mode<synchronous>, transform_indices = @transform_2, window_bounds = array<i64: 128, 128>}, {transform_indices = @transform_3, window_bounds = array<i64: 1, 16, 128>}]} {
    %c0 = arith.constant 0 : index
    %c0_0 = arith.constant 0 : index
    %c0_1 = arith.constant 0 : index
    %0 = vector.load %arg1[%c0, %c0_0, %c0_1] : memref<1x16x128xf32, #tpu.memory_space<vmem>>, vector<1x16x128xf32>
    %1 = vector.shape_cast %0 : vector<1x16x128xf32> to vector<16x128xf32>
    %c0_2 = arith.constant 0 : index
    %c0_3 = arith.constant 0 : index
    %2 = vector.load %arg2[%c0_2, %c0_3] : memref<384x128xf32, #tpu.memory_space<vmem>>, vector<384x128xf32>
    %cst = arith.constant dense<0.000000e+00> : vector<16x384xf32>
    %3 = tpu.matmul %1, %2, %cst {dimension_numbers = #tpu.dot_dimension_numbers<[1], [1], [0], [0], [0, 0, 1, 0], [], []>} : vector<16x128xf32>, vector<384x128xf32>, vector<16x384xf32> -> vector<16x384xf32>
    %4 = tpu.iota {dimensions = array<i32: 0>} : vector<16x16xi32>
    %5 = tpu.iota {dimensions = array<i32: 1>} : vector<16x16xi32>
    %6 = arith.cmpi sgt, %5, %4 : vector<16x16xi32>
    %cst_4 = arith.constant 0.000000e+00 : f32
    %7 = vector.broadcast %cst_4 : f32 to vector<16x128xf32>
    %8 = vector.extract_strided_slice %3 {offsets = [0, 0], sizes = [16, 32], strides = [1, 1]} : vector<16x384xf32> to vector<16x32xf32>
    %cst_5 = arith.constant 0.0883883461 : f32
    %9 = vector.broadcast %cst_5 : f32 to vector<16x32xf32>
    %10 = arith.mulf %8, %9 : vector<16x32xf32>
    %11 = vector.extract_strided_slice %3 {offsets = [0, 128], sizes = [16, 32], strides = [1, 1]} : vector<16x384xf32> to vector<16x32xf32>
    %12 = vector.extract_strided_slice %3 {offsets = [0, 256], sizes = [16, 32], strides = [1, 1]} : vector<16x384xf32> to vector<16x32xf32>
    %cst_6 = arith.constant dense<0.000000e+00> : vector<16x16xf32>
    %13 = tpu.matmul %10, %11, %cst_6 {dimension_numbers = #tpu.dot_dimension_numbers<[1], [1], [0], [0], [0, 0, 1, 0], [], []>} : vector<16x32xf32>, vector<16x32xf32>, vector<16x16xf32> -> vector<16x16xf32>
    %cst_7 = arith.constant 0xFF800000 : f32
    %14 = vector.broadcast %cst_7 : f32 to vector<16x16xf32>
    %15 = arith.select %6, %14, %13 : vector<16x16xi1>, vector<16x16xf32>
    %cst_8 = arith.constant dense<0xFF800000> : vector<16xf32>
    %16 = vector.multi_reduction <maximumf>, %15, %cst_8 [1] : vector<16x16xf32> to vector<16xf32>
    %17 = vector.shape_cast %16 : vector<16xf32> to vector<16x1xf32>
    %18 = vector.broadcast %17 : vector<16x1xf32> to vector<16x16xf32>
    %19 = arith.subf %15, %18 : vector<16x16xf32>
    %20 = math.exp %19 : vector<16x16xf32>
    %cst_9 = arith.constant dense<0.000000e+00> : vector<16xf32>
    %21 = vector.multi_reduction <add>, %20, %cst_9 [1] : vector<16x16xf32> to vector<16xf32>
    %22 = vector.shape_cast %21 : vector<16xf32> to vector<16x1xf32>
    %cst_10 = arith.constant dense<0.000000e+00> : vector<16x32xf32>
    %23 = tpu.matmul %20, %12, %cst_10 {dimension_numbers = #tpu.dot_dimension_numbers<[1], [0], [0], [1], [0, 0, 1, 1], [], []>} : vector<16x16xf32>, vector<16x32xf32>, vector<16x32xf32> -> vector<16x32xf32>
    %24 = tpu.reciprocal %22 {approx = true} : vector<16x1xf32> -> vector<16x1xf32>
    %25 = vector.broadcast %24 : vector<16x1xf32> to vector<16x32xf32>
    %26 = arith.mulf %23, %25 : vector<16x32xf32>
    %c0_11 = arith.constant 0 : index
    %c0_12 = arith.constant 0 : index
    %27 = vector.load %arg3[%c0_11, %c0_12] : memref<128x128xf32, #tpu.memory_space<vmem>>, vector<128x32xf32>
    %cst_13 = arith.constant dense<0.000000e+00> : vector<16x128xf32>
    %28 = tpu.matmul %26, %27, %cst_13 {dimension_numbers = #tpu.dot_dimension_numbers<[1], [1], [0], [0], [0, 0, 1, 0], [], []>} : vector<16x32xf32>, vector<128x32xf32>, vector<16x128xf32> -> vector<16x128xf32>
    %29 = arith.addf %7, %28 : vector<16x128xf32>
    %30 = vector.extract_strided_slice %3 {offsets = [0, 32], sizes = [16, 32], strides = [1, 1]} : vector<16x384xf32> to vector<16x32xf32>
    %cst_14 = arith.constant 0.0883883461 : f32
    %31 = vector.broadcast %cst_14 : f32 to vector<16x32xf32>
    %32 = arith.mulf %30, %31 : vector<16x32xf32>
    %33 = vector.extract_strided_slice %3 {offsets = [0, 160], sizes = [16, 32], strides = [1, 1]} : vector<16x384xf32> to vector<16x32xf32>
    %34 = vector.extract_strided_slice %3 {offsets = [0, 288], sizes = [16, 32], strides = [1, 1]} : vector<16x384xf32> to vector<16x32xf32>
    %cst_15 = arith.constant dense<0.000000e+00> : vector<16x16xf32>
    %35 = tpu.matmul %32, %33, %cst_15 {dimension_numbers = #tpu.dot_dimension_numbers<[1], [1], [0], [0], [0, 0, 1, 0], [], []>} : vector<16x32xf32>, vector<16x32xf32>, vector<16x16xf32> -> vector<16x16xf32>
    %cst_16 = arith.constant 0xFF800000 : f32
    %36 = vector.broadcast %cst_16 : f32 to vector<16x16xf32>
    %37 = arith.select %6, %36, %35 : vector<16x16xi1>, vector<16x16xf32>
    %cst_17 = arith.constant dense<0xFF800000> : vector<16xf32>
    %38 = vector.multi_reduction <maximumf>, %37, %cst_17 [1] : vector<16x16xf32> to vector<16xf32>
    %39 = vector.shape_cast %38 : vector<16xf32> to vector<16x1xf32>
    %40 = vector.broadcast %39 : vector<16x1xf32> to vector<16x16xf32>
    %41 = arith.subf %37, %40 : vector<16x16xf32>
    %42 = math.exp %41 : vector<16x16xf32>
    %cst_18 = arith.constant dense<0.000000e+00> : vector<16xf32>
    %43 = vector.multi_reduction <add>, %42, %cst_18 [1] : vector<16x16xf32> to vector<16xf32>
    %44 = vector.shape_cast %43 : vector<16xf32> to vector<16x1xf32>
    %cst_19 = arith.constant dense<0.000000e+00> : vector<16x32xf32>
    %45 = tpu.matmul %42, %34, %cst_19 {dimension_numbers = #tpu.dot_dimension_numbers<[1], [0], [0], [1], [0, 0, 1, 1], [], []>} : vector<16x16xf32>, vector<16x32xf32>, vector<16x32xf32> -> vector<16x32xf32>
    %46 = tpu.reciprocal %44 {approx = true} : vector<16x1xf32> -> vector<16x1xf32>
    %47 = vector.broadcast %46 : vector<16x1xf32> to vector<16x32xf32>
    %48 = arith.mulf %45, %47 : vector<16x32xf32>
    %c0_20 = arith.constant 0 : index
    %c32 = arith.constant 32 : index
    %49 = vector.load %arg3[%c0_20, %c32] : memref<128x128xf32, #tpu.memory_space<vmem>>, vector<128x32xf32>
    %cst_21 = arith.constant dense<0.000000e+00> : vector<16x128xf32>
    %50 = tpu.matmul %48, %49, %cst_21 {dimension_numbers = #tpu.dot_dimension_numbers<[1], [1], [0], [0], [0, 0, 1, 0], [], []>} : vector<16x32xf32>, vector<128x32xf32>, vector<16x128xf32> -> vector<16x128xf32>
    %51 = arith.addf %29, %50 : vector<16x128xf32>
    %52 = vector.extract_strided_slice %3 {offsets = [0, 64], sizes = [16, 32], strides = [1, 1]} : vector<16x384xf32> to vector<16x32xf32>
    %cst_22 = arith.constant 0.0883883461 : f32
    %53 = vector.broadcast %cst_22 : f32 to vector<16x32xf32>
    %54 = arith.mulf %52, %53 : vector<16x32xf32>
    %55 = vector.extract_strided_slice %3 {offsets = [0, 192], sizes = [16, 32], strides = [1, 1]} : vector<16x384xf32> to vector<16x32xf32>
    %56 = vector.extract_strided_slice %3 {offsets = [0, 320], sizes = [16, 32], strides = [1, 1]} : vector<16x384xf32> to vector<16x32xf32>
    %cst_23 = arith.constant dense<0.000000e+00> : vector<16x16xf32>
    %57 = tpu.matmul %54, %55, %cst_23 {dimension_numbers = #tpu.dot_dimension_numbers<[1], [1], [0], [0], [0, 0, 1, 0], [], []>} : vector<16x32xf32>, vector<16x32xf32>, vector<16x16xf32> -> vector<16x16xf32>
    %cst_24 = arith.constant 0xFF800000 : f32
    %58 = vector.broadcast %cst_24 : f32 to vector<16x16xf32>
    %59 = arith.select %6, %58, %57 : vector<16x16xi1>, vector<16x16xf32>
    %cst_25 = arith.constant dense<0xFF800000> : vector<16xf32>
    %60 = vector.multi_reduction <maximumf>, %59, %cst_25 [1] : vector<16x16xf32> to vector<16xf32>
    %61 = vector.shape_cast %60 : vector<16xf32> to vector<16x1xf32>
    %62 = vector.broadcast %61 : vector<16x1xf32> to vector<16x16xf32>
    %63 = arith.subf %59, %62 : vector<16x16xf32>
    %64 = math.exp %63 : vector<16x16xf32>
    %cst_26 = arith.constant dense<0.000000e+00> : vector<16xf32>
    %65 = vector.multi_reduction <add>, %64, %cst_26 [1] : vector<16x16xf32> to vector<16xf32>
    %66 = vector.shape_cast %65 : vector<16xf32> to vector<16x1xf32>
    %cst_27 = arith.constant dense<0.000000e+00> : vector<16x32xf32>
    %67 = tpu.matmul %64, %56, %cst_27 {dimension_numbers = #tpu.dot_dimension_numbers<[1], [0], [0], [1], [0, 0, 1, 1], [], []>} : vector<16x16xf32>, vector<16x32xf32>, vector<16x32xf32> -> vector<16x32xf32>
    %68 = tpu.reciprocal %66 {approx = true} : vector<16x1xf32> -> vector<16x1xf32>
    %69 = vector.broadcast %68 : vector<16x1xf32> to vector<16x32xf32>
    %70 = arith.mulf %67, %69 : vector<16x32xf32>
    %c0_28 = arith.constant 0 : index
    %c64 = arith.constant 64 : index
    %71 = vector.load %arg3[%c0_28, %c64] : memref<128x128xf32, #tpu.memory_space<vmem>>, vector<128x32xf32>
    %cst_29 = arith.constant dense<0.000000e+00> : vector<16x128xf32>
    %72 = tpu.matmul %70, %71, %cst_29 {dimension_numbers = #tpu.dot_dimension_numbers<[1], [1], [0], [0], [0, 0, 1, 0], [], []>} : vector<16x32xf32>, vector<128x32xf32>, vector<16x128xf32> -> vector<16x128xf32>
    %73 = arith.addf %51, %72 : vector<16x128xf32>
    %74 = vector.extract_strided_slice %3 {offsets = [0, 96], sizes = [16, 32], strides = [1, 1]} : vector<16x384xf32> to vector<16x32xf32>
    %cst_30 = arith.constant 0.0883883461 : f32
    %75 = vector.broadcast %cst_30 : f32 to vector<16x32xf32>
    %76 = arith.mulf %74, %75 : vector<16x32xf32>
    %77 = vector.extract_strided_slice %3 {offsets = [0, 224], sizes = [16, 32], strides = [1, 1]} : vector<16x384xf32> to vector<16x32xf32>
    %78 = vector.extract_strided_slice %3 {offsets = [0, 352], sizes = [16, 32], strides = [1, 1]} : vector<16x384xf32> to vector<16x32xf32>
    %cst_31 = arith.constant dense<0.000000e+00> : vector<16x16xf32>
    %79 = tpu.matmul %76, %77, %cst_31 {dimension_numbers = #tpu.dot_dimension_numbers<[1], [1], [0], [0], [0, 0, 1, 0], [], []>} : vector<16x32xf32>, vector<16x32xf32>, vector<16x16xf32> -> vector<16x16xf32>
    %cst_32 = arith.constant 0xFF800000 : f32
    %80 = vector.broadcast %cst_32 : f32 to vector<16x16xf32>
    %81 = arith.select %6, %80, %79 : vector<16x16xi1>, vector<16x16xf32>
    %cst_33 = arith.constant dense<0xFF800000> : vector<16xf32>
    %82 = vector.multi_reduction <maximumf>, %81, %cst_33 [1] : vector<16x16xf32> to vector<16xf32>
    %83 = vector.shape_cast %82 : vector<16xf32> to vector<16x1xf32>
    %84 = vector.broadcast %83 : vector<16x1xf32> to vector<16x16xf32>
    %85 = arith.subf %81, %84 : vector<16x16xf32>
    %86 = math.exp %85 : vector<16x16xf32>
    %cst_34 = arith.constant dense<0.000000e+00> : vector<16xf32>
    %87 = vector.multi_reduction <add>, %86, %cst_34 [1] : vector<16x16xf32> to vector<16xf32>
    %88 = vector.shape_cast %87 : vector<16xf32> to vector<16x1xf32>
    %cst_35 = arith.constant dense<0.000000e+00> : vector<16x32xf32>
    %89 = tpu.matmul %86, %78, %cst_35 {dimension_numbers = #tpu.dot_dimension_numbers<[1], [0], [0], [1], [0, 0, 1, 1], [], []>} : vector<16x16xf32>, vector<16x32xf32>, vector<16x32xf32> -> vector<16x32xf32>
    %90 = tpu.reciprocal %88 {approx = true} : vector<16x1xf32> -> vector<16x1xf32>
    %91 = vector.broadcast %90 : vector<16x1xf32> to vector<16x32xf32>
    %92 = arith.mulf %89, %91 : vector<16x32xf32>
    %c0_36 = arith.constant 0 : index
    %c96 = arith.constant 96 : index
    %93 = vector.load %arg3[%c0_36, %c96] : memref<128x128xf32, #tpu.memory_space<vmem>>, vector<128x32xf32>
    %cst_37 = arith.constant dense<0.000000e+00> : vector<16x128xf32>
    %94 = tpu.matmul %92, %93, %cst_37 {dimension_numbers = #tpu.dot_dimension_numbers<[1], [1], [0], [0], [0, 0, 1, 0], [], []>} : vector<16x32xf32>, vector<128x32xf32>, vector<16x128xf32> -> vector<16x128xf32>
    %95 = arith.addf %73, %94 : vector<16x128xf32>
    %c0_38 = arith.constant 0 : index
    %c0_39 = arith.constant 0 : index
    %c0_40 = arith.constant 0 : index
    %96 = vector.load %arg4[%c0_38, %c0_39, %c0_40] : memref<1x16x128xf32, #tpu.memory_space<vmem>>, vector<1x16x128xf32>
    %97 = vector.shape_cast %96 : vector<1x16x128xf32> to vector<16x128xf32>
    %98 = vector.shape_cast %95 : vector<16x128xf32> to vector<1x16x128xf32>
    tpu.vector_store %arg4[%c0_38, %c0_39, %c0_40], %98 {strides = array<i32>} : memref<1x16x128xf32, #tpu.memory_space<vmem>>, vector<1x16x128xf32>,
    return
  }
  func.func @transform_0(%arg0: i32) -> (i32, i32, i32) {
    %c0_i32 = arith.constant 0 : i32
    %c0_i32_0 = arith.constant 0 : i32
    %c0_i32_1 = arith.constant 0 : i32
    return %arg0, %c0_i32, %c0_i32_0 : i32, i32, i32
  }
  func.func @transform_1(%arg0: i32) -> (i32, i32) {
    %c0_i32 = arith.constant 0 : i32
    %c0_i32_0 = arith.constant 0 : i32
    %c0_i32_1 = arith.constant 0 : i32
    return %c0_i32, %c0_i32_0 : i32, i32
  }
  func.func @transform_2(%arg0: i32) -> (i32, i32) {
    %c0_i32 = arith.constant 0 : i32
    %c0_i32_0 = arith.constant 0 : i32
    %c0_i32_1 = arith.constant 0 : i32
    return %c0_i32, %c0_i32_0 : i32, i32
  }
  func.func @transform_3(%arg0: i32) -> (i32, i32, i32) {
    %c0_i32 = arith.constant 0 : i32
    %c0_i32_0 = arith.constant 0 : i32
    %c0_i32_1 = arith.constant 0 : i32
    return %arg0, %c0_i32, %c0_i32_0 : i32, i32, i32
  }
}

</mosaic_0001>

<llo_original>
// kernel: tpu_custom_call.1
$region0: #{tpu_custom_call.1}
  #allocation0 [shape = 'u32[]', space=smem, size = 0x4, offset = 0x4, fixed_abs, tag = 'smem constant byte address 0x4 - core index']
  #allocation1 [shape = 'u32[144,128]{1,0:T(1,128)}', space=vmem, size = 0x12000, scoped, tag = 'internal scratch']
  %s0 = inlined_call_operand.hbm [shape: f32[2,16,128], index: 0, kind: input, shape index: {}]
  %s1 = inlined_call_operand.hbm [shape: f32[384,128], index: 1, kind: input, shape index: {}]
  %s2 = inlined_call_operand.hbm [shape: f32[128,128], index: 2, kind: input, shape index: {}]
  %s3 = inlined_call_operand.hbm [shape: f32[2,16,128], index: 3, kind: output, shape index: {}]
  %s4 = sld [smem:[#allocation0]]
  $region57: #{tpu_custom_call.1} parent=0
    _
  %s6 = ssub.s32 1, %s4
  %s7 = scalar_select 0, %s6, %s4
  $region1: #{tpu_custom_call.1} parent=0
    #allocation2 [shape = 'u8[16384]{0}', space=vmem, size = 0x4000, scoped, tag = 'input window, operand 0']
    #allocation3 [shape = 's32[2]{0}', space=sflag, size = 0x8, scoped, tag = 'scoped memory for tpu_custom_call.1']
    #allocation4 [shape = 's32[2]{0}', space=sflag, size = 0x8, scoped, tag = 'scoped memory for tpu_custom_call.1']
    #allocation5 [shape = 'u8[196608]{0}', space=vmem, size = 0x30000, scoped, tag = 'input window, operand 1, single buffered']
    #allocation6 [shape = 's32[1]{0}', space=sflag, size = 0x4, scoped, tag = 'scoped memory for tpu_custom_call.1']
    #allocation7 [shape = 'u8[65536]{0}', space=vmem, size = 0x10000, scoped, tag = 'input window, operand 2, single buffered']
    #allocation8 [shape = 'u8[16384]{0}', space=vmem, size = 0x4000, scoped, tag = 'output window, operand 0']
    %8 = vsyncpa [#allocation3], 0
    %s9 = scalar_lea.sflag [#allocation3], 1
    %10 = vsyncpa %s9, 0
    %11 = vsyncpa [#allocation6], 0
    %12 = vsyncpa [#allocation4], 0
    %s13 = scalar_lea.sflag [#allocation4], 1
    %14 = vsyncpa %s13, 0
    loop: start=0, step=1, limit=4
    $region2: #{tpu_custom_call.1} parent=1 // loop_pre_header
      _
    $region3: #{tpu_custom_call.1} parent=1 // loop_header
      %s16 = sphi 0, %s20
      %p17 = scmp.ge.s32.totalorder %s16, 4
      %s26 = sphi 0, %s28
      %s29 = sphi 0, %s26
      %s30 = sphi 0, %s29
      %s46 = sphi 0, %s30
      %s50 = sphi 0, %s50
      %s52 = sphi 0, %s50
      %s53 = sphi 0, %s52
      %s67 = sphi 0, %s53
      %s71 = sphi 0, %s71
      %s73 = sphi 0, %s71
      %s74 = sphi 0, %s73
      %s88 = sphi 0, %s74
      %s94 = sphi 0, %s96
      %s97 = sphi 0, %s94
      %s98 = sphi 0, %s97
      %s114 = sphi 0, %s98
    $region4: #{tpu_custom_call.1} parent=1 // loop_header_branch
      %19 = sbr.rel (%p17) target = $region8
    $region5: #{tpu_custom_call.1} parent=1 // loop_body
      %s21 = ssub.s32 %s16, 1
      %s22 = ssub.s32 %s16, 2
      %s23 = sadd.s32 %s16, 1
      %s24 = ssub.s32 %s16, %s23
      %p25 = scmp.eq.s32.totalorder %s24, 0
      %s27 = sadd.s32 %s26, 1
      %s28 = scalar_select %p25, %s26, %s27
      %p31 = pneg %p25
      %p32 = scmp.eq.s32.totalorder %s16, 1
      %p33 = por %p31, %p32
      %p34 = scmp.ne.s32.totalorder %s26, %s29
      %p35 = scmp.eq.s32.totalorder %s16, 0
      %p36 = por %p34, %p35
      %p37 = scmp.ne.s32.totalorder %s26, %s29
      %p38 = scmp.eq.s32.totalorder %s21, 1
      %p39 = por %p37, %p38
      %p40 = scmp.ne.s32.totalorder %s29, %s30
      %p41 = scmp.eq.s32.totalorder %s21, 0
      %p42 = por %p40, %p41
      %p43 = scmp.ne.s32.totalorder %s29, %s30
      %p44 = scmp.eq.s32.totalorder %s22, 1
      %p45 = por %p43, %p44
      %p47 = scmp.ne.s32.totalorder %s30, %s46
      %p48 = scmp.eq.s32.totalorder %s22, 0
      %p49 = por %p47, %p48
      %s51 = sadd.s32 %s50, 1
      %p54 = scmp.eq.s32.totalorder %s16, 1
      %p55 = scmp.ne.s32.totalorder %s50, %s52
      %p56 = scmp.eq.s32.totalorder %s16, 0
      %p57 = por %p55, %p56
      %p58 = scmp.ne.s32.totalorder %s50, %s52
      %p59 = scmp.eq.s32.totalorder %s21, 1
      %p60 = por %p58, %p59
      %p61 = scmp.ne.s32.totalorder %s52, %s53
      %p62 = scmp.eq.s32.totalorder %s21, 0
      %p63 = por %p61, %p62
      %p64 = scmp.ne.s32.totalorder %s52, %s53
      %p65 = scmp.eq.s32.totalorder %s22, 1
      %p66 = por %p64, %p65
      %p68 = scmp.ne.s32.totalorder %s53, %s67
      %p69 = scmp.eq.s32.totalorder %s22, 0
      %p70 = por %p68, %p69
      %s72 = sadd.s32 %s71, 1
      %p75 = scmp.eq.s32.totalorder %s16, 1
      %p76 = scmp.ne.s32.totalorder %s71, %s73
      %p77 = scmp.eq.s32.totalorder %s16, 0
      %p78 = por %p76, %p77
      %p79 = scmp.ne.s32.totalorder %s71, %s73
      %p80 = scmp.eq.s32.totalorder %s21, 1
      %p81 = por %p79, %p80
      %p82 = scmp.ne.s32.totalorder %s73, %s74
      %p83 = scmp.eq.s32.totalorder %s21, 0
      %p84 = por %p82, %p83
      %p85 = scmp.ne.s32.totalorder %s73, %s74
      %p86 = scmp.eq.s32.totalorder %s22, 1
      %p87 = por %p85, %p86
      %p89 = scmp.ne.s32.totalorder %s74, %s88
      %p90 = scmp.eq.s32.totalorder %s22, 0
      %p91 = por %p89, %p90
      %s92 = ssub.s32 %s16, %s23
      %p93 = scmp.eq.s32.totalorder %s92, 0
      %s95 = sadd.s32 %s94, 1
      %s96 = scalar_select %p93, %s94, %s95
      %p99 = pneg %p93
      %p100 = scmp.eq.s32.totalorder %s16, 1
      %p101 = por %p99, %p100
      %p102 = scmp.ne.s32.totalorder %s94, %s97
      %p103 = scmp.eq.s32.totalorder %s16, 0
      %p104 = por %p102, %p103
      %p105 = scmp.ne.s32.totalorder %s94, %s97
      %p106 = scmp.eq.s32.totalorder %s21, 1
      %p107 = por %p105, %p106
      %p108 = scmp.ne.s32.totalorder %s97, %s98
      %p109 = scmp.eq.s32.totalorder %s21, 0
      %p110 = por %p108, %p109
      %p111 = scmp.ne.s32.totalorder %s97, %s98
      %p112 = scmp.eq.s32.totalorder %s22, 1
      %p113 = por %p111, %p112
      %p115 = scmp.ne.s32.totalorder %s98, %s114
      %p116 = scmp.eq.s32.totalorder %s22, 0
      %p117 = por %p115, %p116
      %p118 = scmp.le.s32.totalorder 1, %s16
      %p119 = scmp.lt.s32.totalorder %s16, 3
      %p120 = pnand %p118, %p119
      %p121 = pneg %p120
      // Predicated region
      $region9: #{tpu_custom_call.1} parent=5 // pred_check
        _
      $region10: #{tpu_custom_call.1} parent=5 // pred_check_branch
        %123 = sbr.rel (%p120) target = $region12
      $region11: #{tpu_custom_call.1} parent=5 // pred_region
        %s124 = ssub.s32 %s16, 1
        // Predicated region
        $region13: #{tpu_custom_call.1} parent=11 // pred_check
          %p125 = pneg %p63
        $region14: #{tpu_custom_call.1} parent=11 // pred_check_branch
          %127 = sbr.rel (%p125) target = $region16
        $region15: #{tpu_custom_call.1} parent=11 // pred_region
          %s129 = ssub.s32 6144, 6144
          %130 = vsyncadd [#allocation6], %s129
          %s131 = sshll.u32 [#allocation5], 4
          %s132 = int_to_ptr.vmem [resolvable:$true] %s131
          %137 = dma.hbm_to_vmem [thread:$0]  %s1, 6144, %s132, [#allocation6], 128, 128, 8
        $region16: #{tpu_custom_call.1} parent=11 // pred_fallthru
          _
        // Predicated region
        $region17: #{tpu_custom_call.1} parent=11 // pred_check
          %p138 = pneg %p84
        $region18: #{tpu_custom_call.1} parent=11 // pred_check_branch
          %140 = sbr.rel (%p138) target = $region20
        $region19: #{tpu_custom_call.1} parent=11 // pred_region
          %s142 = ssub.s32 2048, 2048
          %143 = vsyncadd [#allocation6], %s142
          %s144 = sshll.u32 [#allocation7], 4
          %s145 = int_to_ptr.vmem [resolvable:$true] %s144
          %150 = dma.hbm_to_vmem [thread:$0]  %s2, 2048, %s145, [#allocation6], 128, 128, 8
        $region20: #{tpu_custom_call.1} parent=11 // pred_fallthru
          _
      $region12: #{tpu_custom_call.1} parent=5 // pred_fallthru
        _
      %p151 = scmp.lt.s32.totalorder %s16, 2
      // Predicated region
      $region21: #{tpu_custom_call.1} parent=5 // pred_check
        %p152 = pneg %p151
      $region22: #{tpu_custom_call.1} parent=5 // pred_check_branch
        %154 = sbr.rel (%p152) target = $region24
      $region23: #{tpu_custom_call.1} parent=5 // pred_region
        // Predicated region
        $region25: #{tpu_custom_call.1} parent=23 // pred_check
          %p155 = pneg %p36
        $region26: #{tpu_custom_call.1} parent=23 // pred_check_branch
          %157 = sbr.rel (%p155) target = $region28
        $region27: #{tpu_custom_call.1} parent=23 // pred_region
          %s158 = sand.u32 %s26, 1
          %s159 = scalar_lea.sflag [#allocation3], %s158
          %s160 = sand.u32 %s26, 1
          %s161 = smul.addr %s160, 16
          %s162 = scalar_lea.vmem [#allocation2], %s161
          %s164 = ssub.s32 256, 256
          %165 = vsyncadd %s159, %s164
          %s166 = smul.addr %s16, 2
          %s167 = smul.addr %s166, 128
          %s168 = scalar_lea.hbm %s0, %s167
          %s169 = sshll.u32 %s162, 4
          %s170 = int_to_ptr.vmem [resolvable:$true] %s169
          %175 = dma.hbm_to_vmem [thread:$0]  %s168, 256, %s170, %s159, 128, 128, 8
        $region28: #{tpu_custom_call.1} parent=23 // pred_fallthru
          _
      $region24: #{tpu_custom_call.1} parent=5 // pred_fallthru
        _
      %p176 = scmp.le.s32.totalorder 1, %s16
      %p177 = scmp.lt.s32.totalorder %s16, 3
      %p178 = pnand %p176, %p177
      %p179 = pneg %p178
      // Predicated region
      $region29: #{tpu_custom_call.1} parent=5 // pred_check
        _
      $region30: #{tpu_custom_call.1} parent=5 // pred_check_branch
        %181 = sbr.rel (%p178) target = $region32
      $region31: #{tpu_custom_call.1} parent=5 // pred_region
        %s182 = ssub.s32 %s16, 1
        %s183 = sand.u32 %s29, 1
        %s184 = scalar_lea.sflag [#allocation3], %s183
        %s185 = sand.u32 %s29, 1
        %s186 = smul.addr %s185, 16
        %s187 = scalar_lea.vmem [#allocation2], %s186
        // Predicated region
        $region33: #{tpu_custom_call.1} parent=31 // pred_check
          %p188 = pneg %p42
        $region34: #{tpu_custom_call.1} parent=31 // pred_check_branch
          %190 = sbr.rel (%p188) target = $region36
        $region35: #{tpu_custom_call.1} parent=31 // pred_region
          %191 = dma.done %s184, 256
        $region36: #{tpu_custom_call.1} parent=31 // pred_fallthru
          _
        // Predicated region
        $region37: #{tpu_custom_call.1} parent=31 // pred_check
          %p192 = pneg %p63
        $region38: #{tpu_custom_call.1} parent=31 // pred_check_branch
          %194 = sbr.rel (%p192) target = $region40
        $region39: #{tpu_custom_call.1} parent=31 // pred_region
          %195 = dma.done [#allocation6], 6144
        $region40: #{tpu_custom_call.1} parent=31 // pred_fallthru
          _
        // Predicated region
        $region41: #{tpu_custom_call.1} parent=31 // pred_check
          %p196 = pneg %p84
        $region42: #{tpu_custom_call.1} parent=31 // pred_check_branch
          %198 = sbr.rel (%p196) target = $region44
        $region43: #{tpu_custom_call.1} parent=31 // pred_region
          %199 = dma.done [#allocation6], 2048
        $region44: #{tpu_custom_call.1} parent=31 // pred_fallthru
          _
        %s200 = sand.u32 %s29, 1
        %s201 = scalar_lea.sflag [#allocation3], %s200
        %s202 = sand.u32 %s29, 1
        %s203 = smul.addr %s202, 16
        %s204 = scalar_lea.vmem [#allocation2], %s203
        %p205 = pneg %p42
        %p206 = pneg %p39
        %p207 = pneg %p63
        %p208 = pneg %p60
        %p209 = pneg %p84
        %p210 = pneg %p81
        %p211 = pneg %p110
        %p212 = pneg %p107
        %s213 = sand.u32 %s97, 1
        %s214 = scalar_lea.sflag [#allocation4], %s213
        %s215 = sand.u32 %s97, 1
        %s216 = smul.addr %s215, 16
        %s217 = scalar_lea.vmem [#allocation8], %s216
        %v218 = vld [vmem:[%s187] sm:$0xff]
        %v219 = vld [vmem:[%s187 + $0x8] sm:$0xff]
        %v220 = vld [vmem:[#allocation5] sm:$0xff]
        %v221 = vld [vmem:[#allocation5 + $0x8] sm:$0xff]
        %v222 = vld [vmem:[#allocation5 + $0x10] sm:$0xff]
        %v223 = vld [vmem:[#allocation5 + $0x18] sm:$0xff]
        %v224 = vld [vmem:[#allocation5 + $0x20] sm:$0xff]
        %v225 = vld [vmem:[#allocation5 + $0x28] sm:$0xff]
        %v226 = vld [vmem:[#allocation5 + $0x30] sm:$0xff]
        %v227 = vld [vmem:[#allocation5 + $0x38] sm:$0xff]
        %v228 = vld [vmem:[#allocation5 + $0x40] sm:$0xff]
        %v229 = vld [vmem:[#allocation5 + $0x48] sm:$0xff]
        %v230 = vld [vmem:[#allocation5 + $0x50] sm:$0xff]
        %v231 = vld [vmem:[#allocation5 + $0x58] sm:$0xff]
        %v232 = vld [vmem:[#allocation5 + $0x60] sm:$0xff]
        %v233 = vld [vmem:[#allocation5 + $0x68] sm:$0xff]
        %v234 = vld [vmem:[#allocation5 + $0x70] sm:$0xff]
        %v235 = vld [vmem:[#allocation5 + $0x78] sm:$0xff]
        %v236 = vld [vmem:[#allocation5 + $0x80] sm:$0xff]
        %v237 = vld [vmem:[#allocation5 + $0x88] sm:$0xff]
        %v238 = vld [vmem:[#allocation5 + $0x90] sm:$0xff]
        %v239 = vld [vmem:[#allocation5 + $0x98] sm:$0xff]
        %v240 = vld [vmem:[#allocation5 + $0xa0] sm:$0xff]
        %v241 = vld [vmem:[#allocation5 + $0xa8] sm:$0xff]
        %v242 = vld [vmem:[#allocation5 + $0xb0] sm:$0xff]
        %v243 = vld [vmem:[#allocation5 + $0xb8] sm:$0xff]
        %v244 = vld [vmem:[#allocation5 + $0xc0] sm:$0xff]
        %v245 = vld [vmem:[#allocation5 + $0xc8] sm:$0xff]
        %v246 = vld [vmem:[#allocation5 + $0xd0] sm:$0xff]
        %v247 = vld [vmem:[#allocation5 + $0xd8] sm:$0xff]
        %v248 = vld [vmem:[#allocation5 + $0xe0] sm:$0xff]
        %v249 = vld [vmem:[#allocation5 + $0xe8] sm:$0xff]
        %v250 = vld [vmem:[#allocation5 + $0xf0] sm:$0xff]
        %v251 = vld [vmem:[#allocation5 + $0xf8] sm:$0xff]
        %v252 = vld [vmem:[#allocation5 + $0x100] sm:$0xff]
        %v253 = vld [vmem:[#allocation5 + $0x108] sm:$0xff]
        %v254 = vld [vmem:[#allocation5 + $0x110] sm:$0xff]
        %v255 = vld [vmem:[#allocation5 + $0x118] sm:$0xff]
        %v256 = vld [vmem:[#allocation5 + $0x120] sm:$0xff]
        %v257 = vld [vmem:[#allocation5 + $0x128] sm:$0xff]
        %v258 = vld [vmem:[#allocation5 + $0x130] sm:$0xff]
        %v259 = vld [vmem:[#allocation5 + $0x138] sm:$0xff]
        %v260 = vld [vmem:[#allocation5 + $0x140] sm:$0xff]
        %v261 = vld [vmem:[#allocation5 + $0x148] sm:$0xff]
        %v262 = vld [vmem:[#allocation5 + $0x150] sm:$0xff]
        %v263 = vld [vmem:[#allocation5 + $0x158] sm:$0xff]
        %v264 = vld [vmem:[#allocation5 + $0x160] sm:$0xff]
        %v265 = vld [vmem:[#allocation5 + $0x168] sm:$0xff]
        %v266 = vld [vmem:[#allocation5 + $0x170] sm:$0xff]
        %v267 = vld [vmem:[#allocation5 + $0x178] sm:$0xff]
        %268 = vmatprep.subr.mxu0 0.0
        %269 = vmatpush1.xpose.msra.mxu0 %v220
        %270 = vmatprep.subr.mxu0 0.0
        %271 = vmatpush1.xpose.msra.mxu0 %v221
        %272 = vmatprep.subr.mxu0 0.0
        %273 = vmatpush1.xpose.msra.mxu0 %v222
        %274 = vmatprep.subr.mxu0 0.0
        %275 = vmatpush1.xpose.msra.mxu0 %v223
        %276 = vmatprep.subr.mxu0 0.0
        %277 = vmatpush1.xpose.msra.mxu0 %v224
        %278 = vmatprep.subr.mxu0 0.0
        %279 = vmatpush1.xpose.msra.mxu0 %v225
        %280 = vmatprep.subr.mxu0 0.0
        %281 = vmatpush1.xpose.msra.mxu0 %v226
        %282 = vmatprep.subr.mxu0 0.0
        %283 = vmatpush1.xpose.msra.mxu0 %v227
        %284 = vmatprep.subr.mxu0 0.0
        %285 = vmatpush1.xpose.msra.mxu0 %v228
        %286 = vmatprep.subr.mxu0 0.0
        %287 = vmatpush1.xpose.msra.mxu0 %v229
        %288 = vmatprep.subr.mxu0 0.0
        %289 = vmatpush1.xpose.msra.mxu0 %v230
        %290 = vmatprep.subr.mxu0 0.0
        %291 = vmatpush1.xpose.msra.mxu0 %v231
        %292 = vmatprep.subr.mxu0 0.0
        %293 = vmatpush1.xpose.msra.mxu0 %v232
        %294 = vmatprep.subr.mxu0 0.0
        %295 = vmatpush1.xpose.msra.mxu0 %v233
        %296 = vmatprep.subr.mxu0 0.0
        %297 = vmatpush1.xpose.msra.mxu0 %v234
        %298 = vmatprep.subr.mxu0 0.0
        %299 = vmatpush1.xpose.msra.mxu0 %v235
        %300 = vmatprep.subr.mxu0 0.0
        %301 = vmatpush1.xpose.msra.mxu0 %v236
        %302 = vmatprep.subr.mxu0 0.0
        %303 = vmatpush1.xpose.msra.mxu0 %v237
        %304 = vmatprep.subr.mxu0 0.0
        %305 = vmatpush1.xpose.msra.mxu0 %v238
        %306 = vmatprep.subr.mxu0 0.0
        %307 = vmatpush1.xpose.msra.mxu0 %v239
        %308 = vmatprep.subr.mxu0 0.0
        %309 = vmatpush1.xpose.msra.mxu0 %v240
        %310 = vmatprep.subr.mxu0 0.0
        %311 = vmatpush1.xpose.msra.mxu0 %v241
        %312 = vmatprep.subr.mxu0 0.0
        %313 = vmatpush1.xpose.msra.mxu0 %v242
        %314 = vmatprep.subr.mxu0 0.0
        %315 = vmatpush1.xpose.msra.mxu0 %v243
        %316 = vmatprep.subr.mxu0 0.0
        %317 = vmatpush1.xpose.msra.mxu0 %v244
        %318 = vmatprep.subr.mxu0 0.0
        %319 = vmatpush1.xpose.msra.mxu0 %v245
        %320 = vmatprep.subr.mxu0 0.0
        %321 = vmatpush1.xpose.msra.mxu0 %v246
        %322 = vmatprep.subr.mxu0 0.0
        %323 = vmatpush1.xpose.msra.mxu0 %v247
        %324 = vmatprep.subr.mxu0 0.0
        %325 = vmatpush1.xpose.msra.mxu0 %v248
        %326 = vmatprep.subr.mxu0 0.0
        %327 = vmatpush1.xpose.msra.mxu0 %v249
        %328 = vmatprep.subr.mxu0 0.0
        %329 = vmatpush1.xpose.msra.mxu0 %v250
        %330 = vmatprep.subr.mxu0 0.0
        %331 = vmatpush1.xpose.msra.mxu0 %v251
        %332 = vmatprep.mubr.f32.mxu0 0.0
        %333 = vmatmul.mubr.f32.gmra.mrb[0].mxu0 %v218
        %v334 = vpop.f32.mrb[0].mxu0
        %v335 = vadd.f32 0.0, %v334
        %v336 = vpop.f32.mrb[0].mxu0
        %v337 = vadd.f32 0.0, %v336
        %338 = vmatprep.mubr.f32.mxu0 0.0
        %339 = vmatmul.mubr.f32.gmra.mrb[0].mxu0 %v219
        %v340 = vpop.f32.mrb[0].mxu0
        %v341 = vadd.f32 0.0, %v340
        %v342 = vpop.f32.mrb[0].mxu0
        %v343 = vadd.f32 0.0, %v342
        %344 = vdwg.mxu0
        %345 = vmatprep.subr.mxu0 0.0
        %346 = vmatpush1.xpose.msra.mxu0 %v252
        %347 = vmatprep.subr.mxu0 0.0
        %348 = vmatpush1.xpose.msra.mxu0 %v253
        %349 = vmatprep.subr.mxu0 0.0
        %350 = vmatpush1.xpose.msra.mxu0 %v254
        %351 = vmatprep.subr.mxu0 0.0
        %352 = vmatpush1.xpose.msra.mxu0 %v255
        %353 = vmatprep.subr.mxu0 0.0
        %354 = vmatpush1.xpose.msra.mxu0 %v256
        %355 = vmatprep.subr.mxu0 0.0
        %356 = vmatpush1.xpose.msra.mxu0 %v257
        %357 = vmatprep.subr.mxu0 0.0
        %358 = vmatpush1.xpose.msra.mxu0 %v258
        %359 = vmatprep.subr.mxu0 0.0
        %360 = vmatpush1.xpose.msra.mxu0 %v259
        %361 = vmatprep.subr.mxu0 0.0
        %362 = vmatpush1.xpose.msra.mxu0 %v260
        %363 = vmatprep.subr.mxu0 0.0
        %364 = vmatpush1.xpose.msra.mxu0 %v261
        %365 = vmatprep.subr.mxu0 0.0
        %366 = vmatpush1.xpose.msra.mxu0 %v262
        %367 = vmatprep.subr.mxu0 0.0
        %368 = vmatpush1.xpose.msra.mxu0 %v263
        %369 = vmatprep.subr.mxu0 0.0
        %370 = vmatpush1.xpose.msra.mxu0 %v264
        %371 = vmatprep.subr.mxu0 0.0
        %372 = vmatpush1.xpose.msra.mxu0 %v265
        %373 = vmatprep.subr.mxu0 0.0
        %374 = vmatpush1.xpose.msra.mxu0 %v266
        %375 = vmatprep.subr.mxu0 0.0
        %376 = vmatpush1.xpose.msra.mxu0 %v267
        %377 = vmatprep.subr.mxu0 0.0
        %378 = vmatpush1.xpose.msra.mxu0 0.0
        %379 = vmatprep.subr.mxu0 0.0
        %380 = vmatpush1.xpose.msra.mxu0 0.0
        %381 = vmatprep.subr.mxu0 0.0
        %382 = vmatpush1.xpose.msra.mxu0 0.0
        %383 = vmatprep.subr.mxu0 0.0
        %384 = vmatpush1.xpose.msra.mxu0 0.0
        %385 = vmatprep.subr.mxu0 0.0
        %386 = vmatpush1.xpose.msra.mxu0 0.0
        %387 = vmatprep.subr.mxu0 0.0
        %388 = vmatpush1.xpose.msra.mxu0 0.0
        %389 = vmatprep.subr.mxu0 0.0
        %390 = vmatpush1.xpose.msra.mxu0 0.0
        %391 = vmatprep.subr.mxu0 0.0
        %392 = vmatpush1.xpose.msra.mxu0 0.0
        %393 = vmatprep.subr.mxu0 0.0
        %394 = vmatpush1.xpose.msra.mxu0 0.0
        %395 = vmatprep.subr.mxu0 0.0
        %396 = vmatpush1.xpose.msra.mxu0 0.0
        %397 = vmatprep.subr.mxu0 0.0
        %398 = vmatpush1.xpose.msra.mxu0 0.0
        %399 = vmatprep.subr.mxu0 0.0
        %400 = vmatpush1.xpose.msra.mxu0 0.0
        %401 = vmatprep.subr.mxu0 0.0
        %402 = vmatpush1.xpose.msra.mxu0 0.0
        %403 = vmatprep.subr.mxu0 0.0
        %404 = vmatpush1.xpose.msra.mxu0 0.0
        %405 = vmatprep.subr.mxu0 0.0
        %406 = vmatpush1.xpose.msra.mxu0 0.0
        %407 = vmatprep.subr.mxu0 0.0
        %408 = vmatpush1.xpose.msra.mxu0 0.0
        %409 = vmatprep.mubr.f32.mxu0 0.0
        %410 = vmatmul.mubr.f32.gmra.mrb[0].mxu0 %v218
        %v411 = vpop.f32.mrb[0].mxu0
        %v412 = vadd.f32 0.0, %v411
        %v413 = vpop.f32.mrb[0].mxu0
        %414 = vmatprep.mubr.f32.mxu0 0.0
        %415 = vmatmul.mubr.f32.gmra.mrb[0].mxu0 %v219
        %v416 = vpop.f32.mrb[0].mxu0
        %v417 = vadd.f32 0.0, %v416
        %v418 = vpop.f32.mrb[0].mxu0
        %419 = vdwg.mxu0
        %v420 = vlaneseq
        %v421 = vshrl.u32 %v420, 7
        %v422 = vadd.s32 %v421, 8
        %v423 = vlaneseq
        %v424 = vand.u32 %v423, 127
        %vm425 = vcmp.gt.s32.totalorder %v424, %v421
        %vm426 = vcmp.gt.s32.totalorder %v424, %v422
        %v427 = vmul.f32 %v335, 0.088388346
        %v428 = vmul.f32 %v341, 0.088388346
        %vm429 = vcmask 261120
        %v431 = vsel %vm429, %v427, 0
        %v434 = vsel %vm429, %v428, 0
        %v437 = vsel %vm429, %v337, 0
        %v440 = vsel %vm429, %v343, 0
        %442 = vmatprep.subr.mxu0 0.0
        %443 = vmatpush1.xpose.msra.mxu0 %v437
        %444 = vmatprep.subr.mxu0 0.0
        %445 = vmatpush1.xpose.msra.mxu0 %v440
        %446 = vmatprep.subr.mxu0 0.0
        %447 = vmatpush1.xpose.msra.mxu0 0.0
        %448 = vmatprep.subr.mxu0 0.0
        %449 = vmatpush1.xpose.msra.mxu0 0.0
        %450 = vmatprep.subr.mxu0 0.0
        %451 = vmatpush1.xpose.msra.mxu0 0.0
        %452 = vmatprep.subr.mxu0 0.0
        %453 = vmatpush1.xpose.msra.mxu0 0.0
        %454 = vmatprep.subr.mxu0 0.0
        %455 = vmatpush1.xpose.msra.mxu0 0.0
        %456 = vmatprep.subr.mxu0 0.0
        %457 = vmatpush1.xpose.msra.mxu0 0.0
        %458 = vmatprep.subr.mxu0 0.0
        %459 = vmatpush1.xpose.msra.mxu0 0.0
        %460 = vmatprep.subr.mxu0 0.0
        %461 = vmatpush1.xpose.msra.mxu0 0.0
        %462 = vmatprep.subr.mxu0 0.0
        %463 = vmatpush1.xpose.msra.mxu0 0.0
        %464 = vmatprep.subr.mxu0 0.0
        %465 = vmatpush1.xpose.msra.mxu0 0.0
        %466 = vmatprep.subr.mxu0 0.0
        %467 = vmatpush1.xpose.msra.mxu0 0.0
        %468 = vmatprep.subr.mxu0 0.0
        %469 = vmatpush1.xpose.msra.mxu0 0.0
        %470 = vmatprep.subr.mxu0 0.0
        %471 = vmatpush1.xpose.msra.mxu0 0.0
        %472 = vmatprep.subr.mxu0 0.0
        %473 = vmatpush1.xpose.msra.mxu0 0.0
        %474 = vmatprep.subr.mxu0 0.0
        %475 = vmatpush1.xpose.msra.mxu0 0.0
        %476 = vmatprep.subr.mxu0 0.0
        %477 = vmatpush1.xpose.msra.mxu0 0.0
        %478 = vmatprep.subr.mxu0 0.0
        %479 = vmatpush1.xpose.msra.mxu0 0.0
        %480 = vmatprep.subr.mxu0 0.0
        %481 = vmatpush1.xpose.msra.mxu0 0.0
        %482 = vmatprep.subr.mxu0 0.0
        %483 = vmatpush1.xpose.msra.mxu0 0.0
        %484 = vmatprep.subr.mxu0 0.0
        %485 = vmatpush1.xpose.msra.mxu0 0.0
        %486 = vmatprep.subr.mxu0 0.0
        %487 = vmatpush1.xpose.msra.mxu0 0.0
        %488 = vmatprep.subr.mxu0 0.0
        %489 = vmatpush1.xpose.msra.mxu0 0.0
        %490 = vmatprep.subr.mxu0 0.0
        %491 = vmatpush1.xpose.msra.mxu0 0.0
        %492 = vmatprep.subr.mxu0 0.0
        %493 = vmatpush1.xpose.msra.mxu0 0.0
        %494 = vmatprep.subr.mxu0 0.0
        %495 = vmatpush1.xpose.msra.mxu0 0.0
        %496 = vmatprep.subr.mxu0 0.0
        %497 = vmatpush1.xpose.msra.mxu0 0.0
        %498 = vmatprep.subr.mxu0 0.0
        %499 = vmatpush1.xpose.msra.mxu0 0.0
        %500 = vmatprep.subr.mxu0 0.0
        %501 = vmatpush1.xpose.msra.mxu0 0.0
        %502 = vmatprep.subr.mxu0 0.0
        %503 = vmatpush1.xpose.msra.mxu0 0.0
        %504 = vmatprep.subr.mxu0 0.0
        %505 = vmatpush1.xpose.msra.mxu0 0.0
        %506 = vmatprep.mubr.f32.mxu0 0.0
        %507 = vmatmul.mubr.f32.gmra.mrb[0].mxu0 %v431
        %v508 = vpop.f32.mrb[0].mxu0
        %v509 = vadd.f32 0.0, %v508
        %v510 = vpop.f32.mrb[0].mxu0
        %511 = vmatprep.mubr.f32.mxu0 0.0
        %512 = vmatmul.mubr.f32.gmra.mrb[0].mxu0 %v434
        %v513 = vpop.f32.mrb[0].mxu0
        %v514 = vadd.f32 0.0, %v513
        %v515 = vpop.f32.mrb[0].mxu0
        %516 = vdwg.mxu0
        %v517 = vsel %vm425, -inf, %v509
        %v518 = vsel %vm426, -inf, %v514
        %vm519 = vcmask 130048
        %v520 = vsel %vm519, %v517, -inf
        %521 = vmax.xlane.f32.xlu0 %v520
        %v522 = vpop.xlane.xlu0 %521
        %v523 = vsel %vm519, %v518, -inf
        %524 = vmax.xlane.f32.xlu0 %v523
        %v525 = vpop.xlane.xlu0 %524
        %v526 = vsub.f32 %v517, %v522
        %v527 = vsub.f32 %v518, %v525
        %v528 = vmul.f32 %v526, 1.442695
        %v529 = vpow.pop %v528
        %v530 = vmul.f32 %v527, 1.442695
        %v531 = vpow.pop %v530
        %v532 = vsel %vm519, %v529, 0.0
        %533 = vadd.xlane.f32.xlu0 %v532
        %v534 = vpop.xlane.xlu0 %533
        %v535 = vsel %vm519, %v531, 0.0
        %536 = vadd.xlane.f32.xlu0 %v535
        %v537 = vpop.xlane.xlu0 %536
        %v539 = vsel %vm519, %v529, 0
        %v542 = vsel %vm519, %v531, 0
        %544 = vmatprep.subr.mxu0 0.0
        %545 = vmatpush1.msra.mxu0 %v412
        %546 = vmatprep.subr.mxu0 0.0
        %547 = vmatpush1.msra.mxu0 %v417
        %548 = vmatprep.subr.mxu0 0.0
        %549 = vmatpush1.msra.mxu0 0.0
        %550 = vmatprep.subr.mxu0 0.0
        %551 = vmatpush1.msra.mxu0 0.0
        %552 = vmatprep.subr.mxu0 0.0
        %553 = vmatpush1.msra.mxu0 0.0
        %554 = vmatprep.subr.mxu0 0.0
        %555 = vmatpush1.msra.mxu0 0.0
        %556 = vmatprep.subr.mxu0 0.0
        %557 = vmatpush1.msra.mxu0 0.0
        %558 = vmatprep.subr.mxu0 0.0
        %559 = vmatpush1.msra.mxu0 0.0
        %560 = vmatprep.subr.mxu0 0.0
        %561 = vmatpush1.msra.mxu0 0.0
        %562 = vmatprep.subr.mxu0 0.0
        %563 = vmatpush1.msra.mxu0 0.0
        %564 = vmatprep.subr.mxu0 0.0
        %565 = vmatpush1.msra.mxu0 0.0
        %566 = vmatprep.subr.mxu0 0.0
        %567 = vmatpush1.msra.mxu0 0.0
        %568 = vmatprep.subr.mxu0 0.0
        %569 = vmatpush1.msra.mxu0 0.0
        %570 = vmatprep.subr.mxu0 0.0
        %571 = vmatpush1.msra.mxu0 0.0
        %572 = vmatprep.subr.mxu0 0.0
        %573 = vmatpush1.msra.mxu0 0.0
        %574 = vmatprep.subr.mxu0 0.0
        %575 = vmatpush1.msra.mxu0 0.0
        %576 = vmatprep.subr.mxu0 0.0
        %577 = vmatpush1.msra.mxu0 0.0
        %578 = vmatprep.subr.mxu0 0.0
        %579 = vmatpush1.msra.mxu0 0.0
        %580 = vmatprep.subr.mxu0 0.0
        %581 = vmatpush1.msra.mxu0 0.0
        %582 = vmatprep.subr.mxu0 0.0
        %583 = vmatpush1.msra.mxu0 0.0
        %584 = vmatprep.subr.mxu0 0.0
        %585 = vmatpush1.msra.mxu0 0.0
        %586 = vmatprep.subr.mxu0 0.0
        %587 = vmatpush1.msra.mxu0 0.0
        %588 = vmatprep.subr.mxu0 0.0
        %589 = vmatpush1.msra.mxu0 0.0
        %590 = vmatprep.subr.mxu0 0.0
        %591 = vmatpush1.msra.mxu0 0.0
        %592 = vmatprep.subr.mxu0 0.0
        %593 = vmatpush1.msra.mxu0 0.0
        %594 = vmatprep.subr.mxu0 0.0
        %595 = vmatpush1.msra.mxu0 0.0
        %596 = vmatprep.subr.mxu0 0.0
        %597 = vmatpush1.msra.mxu0 0.0
        %598 = vmatprep.subr.mxu0 0.0
        %599 = vmatpush1.msra.mxu0 0.0
        %600 = vmatprep.subr.mxu0 0.0
        %601 = vmatpush1.msra.mxu0 0.0
        %602 = vmatprep.subr.mxu0 0.0
        %603 = vmatpush1.msra.mxu0 0.0
        %604 = vmatprep.subr.mxu0 0.0
        %605 = vmatpush1.msra.mxu0 0.0
        %606 = vmatprep.subr.mxu0 0.0
        %607 = vmatpush1.msra.mxu0 0.0
        %608 = vmatprep.mubr.f32.mxu0 0.0
        %609 = vmatmul.mubr.f32.gmra.mrb[0].mxu0 %v539
        %v610 = vpop.f32.mrb[0].mxu0
        %v611 = vadd.f32 0.0, %v610
        %v612 = vpop.f32.mrb[0].mxu0
        %613 = vmatprep.mubr.f32.mxu0 0.0
        %614 = vmatmul.mubr.f32.gmra.mrb[0].mxu0 %v542
        %v615 = vpop.f32.mrb[0].mxu0
        %v616 = vadd.f32 0.0, %v615
        %v617 = vpop.f32.mrb[0].mxu0
        %618 = vdwg.mxu0
        %v619 = vrcp.pop %v534
        %v620 = vrcp.pop %v537
        %v621 = vmul.f32 %v611, %v619
        %v622 = vmul.f32 %v616, %v620
        %v623 = vld [vmem:[#allocation7] sm:$0xff]
        %v624 = vld [vmem:[#allocation7 + $0x8] sm:$0xff]
        %v625 = vld [vmem:[#allocation7 + $0x10] sm:$0xff]
        %v626 = vld [vmem:[#allocation7 + $0x18] sm:$0xff]
        %v627 = vld [vmem:[#allocation7 + $0x20] sm:$0xff]
        %v628 = vld [vmem:[#allocation7 + $0x28] sm:$0xff]
        %v629 = vld [vmem:[#allocation7 + $0x30] sm:$0xff]
        %v630 = vld [vmem:[#allocation7 + $0x38] sm:$0xff]
        %v631 = vld [vmem:[#allocation7 + $0x40] sm:$0xff]
        %v632 = vld [vmem:[#allocation7 + $0x48] sm:$0xff]
        %v633 = vld [vmem:[#allocation7 + $0x50] sm:$0xff]
        %v634 = vld [vmem:[#allocation7 + $0x58] sm:$0xff]
        %v635 = vld [vmem:[#allocation7 + $0x60] sm:$0xff]
        %v636 = vld [vmem:[#allocation7 + $0x68] sm:$0xff]
        %v637 = vld [vmem:[#allocation7 + $0x70] sm:$0xff]
        %v638 = vld [vmem:[#allocation7 + $0x78] sm:$0xff]
        %639 = vrot.lane.b32.xlu0 %v427, 96
        %v640 = vpop.permute.xlu0 %639
        %641 = vrot.lane.b32.xlu0 %v428, 96
        %v642 = vpop.permute.xlu0 %641
        %643 = vrot.lane.b32.xlu0 %v337, 96
        %v644 = vpop.permute.xlu0 %643
        %645 = vrot.lane.b32.xlu0 %v343, 96
        %v646 = vpop.permute.xlu0 %645
        %v647 = vsel %vm429, %v640, 0
        %v649 = vsel %vm429, %v642, 0
        %v651 = vsel %vm429, %v644, 0
        %v653 = vsel %vm429, %v646, 0
        %655 = vmatprep.subr.mxu0 0.0
        %656 = vmatpush1.xpose.msra.mxu0 %v651
        %657 = vmatprep.subr.mxu0 0.0
        %658 = vmatpush1.xpose.msra.mxu0 %v653
        %659 = vmatprep.subr.mxu0 0.0
        %660 = vmatpush1.xpose.msra.mxu0 0.0
        %661 = vmatprep.subr.mxu0 0.0
        %662 = vmatpush1.xpose.msra.mxu0 0.0
        %663 = vmatprep.subr.mxu0 0.0
        %664 = vmatpush1.xpose.msra.mxu0 0.0
        %665 = vmatprep.subr.mxu0 0.0
        %666 = vmatpush1.xpose.msra.mxu0 0.0
        %667 = vmatprep.subr.mxu0 0.0
        %668 = vmatpush1.xpose.msra.mxu0 0.0
        %669 = vmatprep.subr.mxu0 0.0
        %670 = vmatpush1.xpose.msra.mxu0 0.0
        %671 = vmatprep.subr.mxu0 0.0
        %672 = vmatpush1.xpose.msra.mxu0 0.0
        %673 = vmatprep.subr.mxu0 0.0
        %674 = vmatpush1.xpose.msra.mxu0 0.0
        %675 = vmatprep.subr.mxu0 0.0
        %676 = vmatpush1.xpose.msra.mxu0 0.0
        %677 = vmatprep.subr.mxu0 0.0
        %678 = vmatpush1.xpose.msra.mxu0 0.0
        %679 = vmatprep.subr.mxu0 0.0
        %680 = vmatpush1.xpose.msra.mxu0 0.0
        %681 = vmatprep.subr.mxu0 0.0
        %682 = vmatpush1.xpose.msra.mxu0 0.0
        %683 = vmatprep.subr.mxu0 0.0
        %684 = vmatpush1.xpose.msra.mxu0 0.0
        %685 = vmatprep.subr.mxu0 0.0
        %686 = vmatpush1.xpose.msra.mxu0 0.0
        %687 = vmatprep.subr.mxu0 0.0
        %688 = vmatpush1.xpose.msra.mxu0 0.0
        %689 = vmatprep.subr.mxu0 0.0
        %690 = vmatpush1.xpose.msra.mxu0 0.0
        %691 = vmatprep.subr.mxu0 0.0
        %692 = vmatpush1.xpose.msra.mxu0 0.0
        %693 = vmatprep.subr.mxu0 0.0
        %694 = vmatpush1.xpose.msra.mxu0 0.0
        %695 = vmatprep.subr.mxu0 0.0
        %696 = vmatpush1.xpose.msra.mxu0 0.0
        %697 = vmatprep.subr.mxu0 0.0
        %698 = vmatpush1.xpose.msra.mxu0 0.0
        %699 = vmatprep.subr.mxu0 0.0
        %700 = vmatpush1.xpose.msra.mxu0 0.0
        %701 = vmatprep.subr.mxu0 0.0
        %702 = vmatpush1.xpose.msra.mxu0 0.0
        %703 = vmatprep.subr.mxu0 0.0
        %704 = vmatpush1.xpose.msra.mxu0 0.0
        %705 = vmatprep.subr.mxu0 0.0
        %706 = vmatpush1.xpose.msra.mxu0 0.0
        %707 = vmatprep.subr.mxu0 0.0
        %708 = vmatpush1.xpose.msra.mxu0 0.0
        %709 = vmatprep.subr.mxu0 0.0
        %710 = vmatpush1.xpose.msra.mxu0 0.0
        %711 = vmatprep.subr.mxu0 0.0
        %712 = vmatpush1.xpose.msra.mxu0 0.0
        %713 = vmatprep.subr.mxu0 0.0
        %714 = vmatpush1.xpose.msra.mxu0 0.0
        %715 = vmatprep.subr.mxu0 0.0
        %716 = vmatpush1.xpose.msra.mxu0 0.0
        %717 = vmatprep.subr.mxu0 0.0
        %718 = vmatpush1.xpose.msra.mxu0 0.0
        %719 = vmatprep.mubr.f32.mxu0 0.0
        %720 = vmatmul.mubr.f32.gmra.mrb[0].mxu0 %v647
        %v721 = vpop.f32.mrb[0].mxu0
        %v722 = vadd.f32 0.0, %v721
        %v723 = vpop.f32.mrb[0].mxu0
        %724 = vmatprep.mubr.f32.mxu0 0.0
        %725 = vmatmul.mubr.f32.gmra.mrb[0].mxu0 %v649
        %v726 = vpop.f32.mrb[0].mxu0
        %v727 = vadd.f32 0.0, %v726
        %v728 = vpop.f32.mrb[0].mxu0
        %729 = vdwg.mxu0
        %v730 = vsel %vm425, -inf, %v722
        %v731 = vsel %vm426, -inf, %v727
        %v732 = vsel %vm519, %v730, -inf
        %733 = vmax.xlane.f32.xlu0 %v732
        %v734 = vpop.xlane.xlu0 %733
        %v735 = vsel %vm519, %v731, -inf
        %736 = vmax.xlane.f32.xlu0 %v735
        %v737 = vpop.xlane.xlu0 %736
        %v738 = vsub.f32 %v730, %v734
        %v739 = vsub.f32 %v731, %v737
        %v740 = vmul.f32 %v738, 1.442695
        %v741 = vpow.pop %v740
        %v742 = vmul.f32 %v739, 1.442695
        %v743 = vpow.pop %v742
        %v744 = vsel %vm519, %v741, 0.0
        %745 = vadd.xlane.f32.xlu0 %v744
        %v746 = vpop.xlane.xlu0 %745
        %v747 = vsel %vm519, %v743, 0.0
        %748 = vadd.xlane.f32.xlu0 %v747
        %v749 = vpop.xlane.xlu0 %748
        %752 = vrot.lane.b32.xlu0 %v412, 96
        %v753 = vpop.permute.xlu0 %752
        %754 = vrot.lane.b32.xlu0 %v417, 96
        %v755 = vpop.permute.xlu0 %754
        %v759 = vsel %vm519, %v741, 0
        %v762 = vsel %vm519, %v743, 0
        %764 = vmatprep.subr.mxu0 0.0
        %765 = vmatpush1.msra.mxu0 %v753
        %766 = vmatprep.subr.mxu0 0.0
        %767 = vmatpush1.msra.mxu0 %v755
        %768 = vmatprep.subr.mxu0 0.0
        %769 = vmatpush1.msra.mxu0 0.0
        %770 = vmatprep.subr.mxu0 0.0
        %771 = vmatpush1.msra.mxu0 0.0
        %772 = vmatprep.subr.mxu0 0.0
        %773 = vmatpush1.msra.mxu0 0.0
        %774 = vmatprep.subr.mxu0 0.0
        %775 = vmatpush1.msra.mxu0 0.0
        %776 = vmatprep.subr.mxu0 0.0
        %777 = vmatpush1.msra.mxu0 0.0
        %778 = vmatprep.subr.mxu0 0.0
        %779 = vmatpush1.msra.mxu0 0.0
        %780 = vmatprep.subr.mxu0 0.0
        %781 = vmatpush1.msra.mxu0 0.0
        %782 = vmatprep.subr.mxu0 0.0
        %783 = vmatpush1.msra.mxu0 0.0
        %784 = vmatprep.subr.mxu0 0.0
        %785 = vmatpush1.msra.mxu0 0.0
        %786 = vmatprep.subr.mxu0 0.0
        %787 = vmatpush1.msra.mxu0 0.0
        %788 = vmatprep.subr.mxu0 0.0
        %789 = vmatpush1.msra.mxu0 0.0
        %790 = vmatprep.subr.mxu0 0.0
        %791 = vmatpush1.msra.mxu0 0.0
        %792 = vmatprep.subr.mxu0 0.0
        %793 = vmatpush1.msra.mxu0 0.0
        %794 = vmatprep.subr.mxu0 0.0
        %795 = vmatpush1.msra.mxu0 0.0
        %796 = vmatprep.subr.mxu0 0.0
        %797 = vmatpush1.msra.mxu0 0.0
        %798 = vmatprep.subr.mxu0 0.0
        %799 = vmatpush1.msra.mxu0 0.0
        %800 = vmatprep.subr.mxu0 0.0
        %801 = vmatpush1.msra.mxu0 0.0
        %802 = vmatprep.subr.mxu0 0.0
        %803 = vmatpush1.msra.mxu0 0.0
        %804 = vmatprep.subr.mxu0 0.0
        %805 = vmatpush1.msra.mxu0 0.0
        %806 = vmatprep.subr.mxu0 0.0
        %807 = vmatpush1.msra.mxu0 0.0
        %808 = vmatprep.subr.mxu0 0.0
        %809 = vmatpush1.msra.mxu0 0.0
        %810 = vmatprep.subr.mxu0 0.0
        %811 = vmatpush1.msra.mxu0 0.0
        %812 = vmatprep.subr.mxu0 0.0
        %813 = vmatpush1.msra.mxu0 0.0
        %814 = vmatprep.subr.mxu0 0.0
        %815 = vmatpush1.msra.mxu0 0.0
        %816 = vmatprep.subr.mxu0 0.0
        %817 = vmatpush1.msra.mxu0 0.0
        %818 = vmatprep.subr.mxu0 0.0
        %819 = vmatpush1.msra.mxu0 0.0
        %820 = vmatprep.subr.mxu0 0.0
        %821 = vmatpush1.msra.mxu0 0.0
        %822 = vmatprep.subr.mxu0 0.0
        %823 = vmatpush1.msra.mxu0 0.0
        %824 = vmatprep.subr.mxu0 0.0
        %825 = vmatpush1.msra.mxu0 0.0
        %826 = vmatprep.subr.mxu0 0.0
        %827 = vmatpush1.msra.mxu0 0.0
        %828 = vmatprep.mubr.f32.mxu0 0.0
        %829 = vmatmul.mubr.f32.gmra.mrb[0].mxu0 %v759
        %v830 = vpop.f32.mrb[0].mxu0
        %v831 = vadd.f32 0.0, %v830
        %v832 = vpop.f32.mrb[0].mxu0
        %833 = vmatprep.mubr.f32.mxu0 0.0
        %834 = vmatmul.mubr.f32.gmra.mrb[0].mxu0 %v762
        %v835 = vpop.f32.mrb[0].mxu0
        %v836 = vadd.f32 0.0, %v835
        %v837 = vpop.f32.mrb[0].mxu0
        %838 = vdwg.mxu0
        %v839 = vrcp.pop %v746
        %v840 = vrcp.pop %v749
        %v841 = vmul.f32 %v831, %v839
        %v842 = vmul.f32 %v836, %v840
        %859 = vrot.lane.b32.xlu0 %v623, 96
        %v860 = vpop.permute.xlu0 %859
        %861 = vrot.lane.b32.xlu0 %v624, 96
        %v862 = vpop.permute.xlu0 %861
        %863 = vrot.lane.b32.xlu0 %v625, 96
        %v864 = vpop.permute.xlu0 %863
        %865 = vrot.lane.b32.xlu0 %v626, 96
        %v866 = vpop.permute.xlu0 %865
        %867 = vrot.lane.b32.xlu0 %v627, 96
        %v868 = vpop.permute.xlu0 %867
        %869 = vrot.lane.b32.xlu0 %v628, 96
        %v870 = vpop.permute.xlu0 %869
        %871 = vrot.lane.b32.xlu0 %v629, 96
        %v872 = vpop.permute.xlu0 %871
        %873 = vrot.lane.b32.xlu0 %v630, 96
        %v874 = vpop.permute.xlu0 %873
        %875 = vrot.lane.b32.xlu0 %v631, 96
        %v876 = vpop.permute.xlu0 %875
        %877 = vrot.lane.b32.xlu0 %v632, 96
        %v878 = vpop.permute.xlu0 %877
        %879 = vrot.lane.b32.xlu0 %v633, 96
        %v880 = vpop.permute.xlu0 %879
        %881 = vrot.lane.b32.xlu0 %v634, 96
        %v882 = vpop.permute.xlu0 %881
        %883 = vrot.lane.b32.xlu0 %v635, 96
        %v884 = vpop.permute.xlu0 %883
        %885 = vrot.lane.b32.xlu0 %v636, 96
        %v886 = vpop.permute.xlu0 %885
        %887 = vrot.lane.b32.xlu0 %v637, 96
        %v888 = vpop.permute.xlu0 %887
        %889 = vrot.lane.b32.xlu0 %v638, 96
        %v890 = vpop.permute.xlu0 %889
        %v892 = vsel %vm429, %v841, 0
        %v895 = vsel %vm429, %v842, 0
        %v897 = vsel %vm429, %v860, 0
        %v899 = vsel %vm429, %v862, 0
        %v901 = vsel %vm429, %v864, 0
        %v903 = vsel %vm429, %v866, 0
        %v905 = vsel %vm429, %v868, 0
        %v907 = vsel %vm429, %v870, 0
        %v909 = vsel %vm429, %v872, 0
        %v911 = vsel %vm429, %v874, 0
        %v913 = vsel %vm429, %v876, 0
        %v915 = vsel %vm429, %v878, 0
        %v917 = vsel %vm429, %v880, 0
        %v919 = vsel %vm429, %v882, 0
        %v921 = vsel %vm429, %v884, 0
        %v923 = vsel %vm429, %v886, 0
        %v925 = vsel %vm429, %v888, 0
        %v927 = vsel %vm429, %v890, 0
        %929 = vmatprep.subr.mxu0 0.0
        %930 = vmatpush1.xpose.msra.mxu0 %v897
        %931 = vmatprep.subr.mxu0 0.0
        %932 = vmatpush1.xpose.msra.mxu0 %v899
        %933 = vmatprep.subr.mxu0 0.0
        %934 = vmatpush1.xpose.msra.mxu0 %v901
        %935 = vmatprep.subr.mxu0 0.0
        %936 = vmatpush1.xpose.msra.mxu0 %v903
        %937 = vmatprep.subr.mxu0 0.0
        %938 = vmatpush1.xpose.msra.mxu0 %v905
        %939 = vmatprep.subr.mxu0 0.0
        %940 = vmatpush1.xpose.msra.mxu0 %v907
        %941 = vmatprep.subr.mxu0 0.0
        %942 = vmatpush1.xpose.msra.mxu0 %v909
        %943 = vmatprep.subr.mxu0 0.0
        %944 = vmatpush1.xpose.msra.mxu0 %v911
        %945 = vmatprep.subr.mxu0 0.0
        %946 = vmatpush1.xpose.msra.mxu0 %v913
        %947 = vmatprep.subr.mxu0 0.0
        %948 = vmatpush1.xpose.msra.mxu0 %v915
        %949 = vmatprep.subr.mxu0 0.0
        %950 = vmatpush1.xpose.msra.mxu0 %v917
        %951 = vmatprep.subr.mxu0 0.0
        %952 = vmatpush1.xpose.msra.mxu0 %v919
        %953 = vmatprep.subr.mxu0 0.0
        %954 = vmatpush1.xpose.msra.mxu0 %v921
        %955 = vmatprep.subr.mxu0 0.0
        %956 = vmatpush1.xpose.msra.mxu0 %v923
        %957 = vmatprep.subr.mxu0 0.0
        %958 = vmatpush1.xpose.msra.mxu0 %v925
        %959 = vmatprep.subr.mxu0 0.0
        %960 = vmatpush1.xpose.msra.mxu0 %v927
        %961 = vmatprep.subr.mxu0 0.0
        %962 = vmatpush1.xpose.msra.mxu0 0.0
        %963 = vmatprep.subr.mxu0 0.0
        %964 = vmatpush1.xpose.msra.mxu0 0.0
        %965 = vmatprep.subr.mxu0 0.0
        %966 = vmatpush1.xpose.msra.mxu0 0.0
        %967 = vmatprep.subr.mxu0 0.0
        %968 = vmatpush1.xpose.msra.mxu0 0.0
        %969 = vmatprep.subr.mxu0 0.0
        %970 = vmatpush1.xpose.msra.mxu0 0.0
        %971 = vmatprep.subr.mxu0 0.0
        %972 = vmatpush1.xpose.msra.mxu0 0.0
        %973 = vmatprep.subr.mxu0 0.0
        %974 = vmatpush1.xpose.msra.mxu0 0.0
        %975 = vmatprep.subr.mxu0 0.0
        %976 = vmatpush1.xpose.msra.mxu0 0.0
        %977 = vmatprep.subr.mxu0 0.0
        %978 = vmatpush1.xpose.msra.mxu0 0.0
        %979 = vmatprep.subr.mxu0 0.0
        %980 = vmatpush1.xpose.msra.mxu0 0.0
        %981 = vmatprep.subr.mxu0 0.0
        %982 = vmatpush1.xpose.msra.mxu0 0.0
        %983 = vmatprep.subr.mxu0 0.0
        %984 = vmatpush1.xpose.msra.mxu0 0.0
        %985 = vmatprep.subr.mxu0 0.0
        %986 = vmatpush1.xpose.msra.mxu0 0.0
        %987 = vmatprep.subr.mxu0 0.0
        %988 = vmatpush1.xpose.msra.mxu0 0.0
        %989 = vmatprep.subr.mxu0 0.0
        %990 = vmatpush1.xpose.msra.mxu0 0.0
        %991 = vmatprep.subr.mxu0 0.0
        %992 = vmatpush1.xpose.msra.mxu0 0.0
        %993 = vmatprep.mubr.f32.mxu0 0.0
        %994 = vmatmul.mubr.f32.gmra.mrb[0].mxu0 %v892
        %v995 = vpop.f32.mrb[0].mxu0
        %v996 = vadd.f32 0.0, %v995
        %v997 = vpop.f32.mrb[0].mxu0
        %998 = vmatprep.mubr.f32.mxu0 0.0
        %999 = vmatmul.mubr.f32.gmra.mrb[0].mxu0 %v895
        %v1000 = vpop.f32.mrb[0].mxu0
        %v1001 = vadd.f32 0.0, %v1000
        %v1002 = vpop.f32.mrb[0].mxu0
        %1003 = vdwg.mxu0
        %v1005 = vsel %vm429, %v621, 0
        %v1008 = vsel %vm429, %v622, 0
        %v1010 = vsel %vm429, %v623, 0
        %v1012 = vsel %vm429, %v624, 0
        %v1014 = vsel %vm429, %v625, 0
        %v1016 = vsel %vm429, %v626, 0
        %v1018 = vsel %vm429, %v627, 0
        %v1020 = vsel %vm429, %v628, 0
        %v1022 = vsel %vm429, %v629, 0
        %v1024 = vsel %vm429, %v630, 0
        %v1026 = vsel %vm429, %v631, 0
        %v1028 = vsel %vm429, %v632, 0
        %v1030 = vsel %vm429, %v633, 0
        %v1032 = vsel %vm429, %v634, 0
        %v1034 = vsel %vm429, %v635, 0
        %v1036 = vsel %vm429, %v636, 0
        %v1038 = vsel %vm429, %v637, 0
        %v1040 = vsel %vm429, %v638, 0
        %1042 = vmatprep.subr.mxu0 0.0
        %1043 = vmatpush1.xpose.msra.mxu0 %v1010
        %1044 = vmatprep.subr.mxu0 0.0
        %1045 = vmatpush1.xpose.msra.mxu0 %v1012
        %1046 = vmatprep.subr.mxu0 0.0
        %1047 = vmatpush1.xpose.msra.mxu0 %v1014
        %1048 = vmatprep.subr.mxu0 0.0
        %1049 = vmatpush1.xpose.msra.mxu0 %v1016
        %1050 = vmatprep.subr.mxu0 0.0
        %1051 = vmatpush1.xpose.msra.mxu0 %v1018
        %1052 = vmatprep.subr.mxu0 0.0
        %1053 = vmatpush1.xpose.msra.mxu0 %v1020
        %1054 = vmatprep.subr.mxu0 0.0
        %1055 = vmatpush1.xpose.msra.mxu0 %v1022
        %1056 = vmatprep.subr.mxu0 0.0
        %1057 = vmatpush1.xpose.msra.mxu0 %v1024
        %1058 = vmatprep.subr.mxu0 0.0
        %1059 = vmatpush1.xpose.msra.mxu0 %v1026
        %1060 = vmatprep.subr.mxu0 0.0
        %1061 = vmatpush1.xpose.msra.mxu0 %v1028
        %1062 = vmatprep.subr.mxu0 0.0
        %1063 = vmatpush1.xpose.msra.mxu0 %v1030
        %1064 = vmatprep.subr.mxu0 0.0
        %1065 = vmatpush1.xpose.msra.mxu0 %v1032
        %1066 = vmatprep.subr.mxu0 0.0
        %1067 = vmatpush1.xpose.msra.mxu0 %v1034
        %1068 = vmatprep.subr.mxu0 0.0
        %1069 = vmatpush1.xpose.msra.mxu0 %v1036
        %1070 = vmatprep.subr.mxu0 0.0
        %1071 = vmatpush1.xpose.msra.mxu0 %v1038
        %1072 = vmatprep.subr.mxu0 0.0
        %1073 = vmatpush1.xpose.msra.mxu0 %v1040
        %1074 = vmatprep.subr.mxu0 0.0
        %1075 = vmatpush1.xpose.msra.mxu0 0.0
        %1076 = vmatprep.subr.mxu0 0.0
        %1077 = vmatpush1.xpose.msra.mxu0 0.0
        %1078 = vmatprep.subr.mxu0 0.0
        %1079 = vmatpush1.xpose.msra.mxu0 0.0
        %1080 = vmatprep.subr.mxu0 0.0
        %1081 = vmatpush1.xpose.msra.mxu0 0.0
        %1082 = vmatprep.subr.mxu0 0.0
        %1083 = vmatpush1.xpose.msra.mxu0 0.0
        %1084 = vmatprep.subr.mxu0 0.0
        %1085 = vmatpush1.xpose.msra.mxu0 0.0
        %1086 = vmatprep.subr.mxu0 0.0
        %1087 = vmatpush1.xpose.msra.mxu0 0.0
        %1088 = vmatprep.subr.mxu0 0.0
        %1089 = vmatpush1.xpose.msra.mxu0 0.0
        %1090 = vmatprep.subr.mxu0 0.0
        %1091 = vmatpush1.xpose.msra.mxu0 0.0
        %1092 = vmatprep.subr.mxu0 0.0
        %1093 = vmatpush1.xpose.msra.mxu0 0.0
        %1094 = vmatprep.subr.mxu0 0.0
        %1095 = vmatpush1.xpose.msra.mxu0 0.0
        %1096 = vmatprep.subr.mxu0 0.0
        %1097 = vmatpush1.xpose.msra.mxu0 0.0
        %1098 = vmatprep.subr.mxu0 0.0
        %1099 = vmatpush1.xpose.msra.mxu0 0.0
        %1100 = vmatprep.subr.mxu0 0.0
        %1101 = vmatpush1.xpose.msra.mxu0 0.0
        %1102 = vmatprep.subr.mxu0 0.0
        %1103 = vmatpush1.xpose.msra.mxu0 0.0
        %1104 = vmatprep.subr.mxu0 0.0
        %1105 = vmatpush1.xpose.msra.mxu0 0.0
        %1106 = vmatprep.mubr.f32.mxu0 0.0
        %1107 = vmatmul.mubr.f32.gmra.mrb[0].mxu0 %v1005
        %v1108 = vpop.f32.mrb[0].mxu0
        %v1109 = vadd.f32 %v996, %v1108
        %v1110 = vpop.f32.mrb[0].mxu0
        %1111 = vmatprep.mubr.f32.mxu0 0.0
        %1112 = vmatmul.mubr.f32.gmra.mrb[0].mxu0 %v1008
        %v1113 = vpop.f32.mrb[0].mxu0
        %v1114 = vadd.f32 %v1001, %v1113
        %v1115 = vpop.f32.mrb[0].mxu0
        %1116 = vdwg.mxu0
        %1117 = vrot.lane.b32.xlu0 %v427, 64
        %v1118 = vpop.permute.xlu0 %1117
        %1119 = vrot.lane.b32.xlu0 %v428, 64
        %v1120 = vpop.permute.xlu0 %1119
        %1121 = vrot.lane.b32.xlu0 %v337, 64
        %v1122 = vpop.permute.xlu0 %1121
        %1123 = vrot.lane.b32.xlu0 %v343, 64
        %v1124 = vpop.permute.xlu0 %1123
        %v1125 = vsel %vm429, %v1118, 0
        %v1127 = vsel %vm429, %v1120, 0
        %v1129 = vsel %vm429, %v1122, 0
        %v1131 = vsel %vm429, %v1124, 0
        %1133 = vmatprep.subr.mxu0 0.0
        %1134 = vmatpush1.xpose.msra.mxu0 %v1129
        %1135 = vmatprep.subr.mxu0 0.0
        %1136 = vmatpush1.xpose.msra.mxu0 %v1131
        %1137 = vmatprep.subr.mxu0 0.0
        %1138 = vmatpush1.xpose.msra.mxu0 0.0
        %1139 = vmatprep.subr.mxu0 0.0
        %1140 = vmatpush1.xpose.msra.mxu0 0.0
        %1141 = vmatprep.subr.mxu0 0.0
        %1142 = vmatpush1.xpose.msra.mxu0 0.0
        %1143 = vmatprep.subr.mxu0 0.0
        %1144 = vmatpush1.xpose.msra.mxu0 0.0
        %1145 = vmatprep.subr.mxu0 0.0
        %1146 = vmatpush1.xpose.msra.mxu0 0.0
        %1147 = vmatprep.subr.mxu0 0.0
        %1148 = vmatpush1.xpose.msra.mxu0 0.0
        %1149 = vmatprep.subr.mxu0 0.0
        %1150 = vmatpush1.xpose.msra.mxu0 0.0
        %1151 = vmatprep.subr.mxu0 0.0
        %1152 = vmatpush1.xpose.msra.mxu0 0.0
        %1153 = vmatprep.subr.mxu0 0.0
        %1154 = vmatpush1.xpose.msra.mxu0 0.0
        %1155 = vmatprep.subr.mxu0 0.0
        %1156 = vmatpush1.xpose.msra.mxu0 0.0
        %1157 = vmatprep.subr.mxu0 0.0
        %1158 = vmatpush1.xpose.msra.mxu0 0.0
        %1159 = vmatprep.subr.mxu0 0.0
        %1160 = vmatpush1.xpose.msra.mxu0 0.0
        %1161 = vmatprep.subr.mxu0 0.0
        %1162 = vmatpush1.xpose.msra.mxu0 0.0
        %1163 = vmatprep.subr.mxu0 0.0
        %1164 = vmatpush1.xpose.msra.mxu0 0.0
        %1165 = vmatprep.subr.mxu0 0.0
        %1166 = vmatpush1.xpose.msra.mxu0 0.0
        %1167 = vmatprep.subr.mxu0 0.0
        %1168 = vmatpush1.xpose.msra.mxu0 0.0
        %1169 = vmatprep.subr.mxu0 0.0
        %1170 = vmatpush1.xpose.msra.mxu0 0.0
        %1171 = vmatprep.subr.mxu0 0.0
        %1172 = vmatpush1.xpose.msra.mxu0 0.0
        %1173 = vmatprep.subr.mxu0 0.0
        %1174 = vmatpush1.xpose.msra.mxu0 0.0
        %1175 = vmatprep.subr.mxu0 0.0
        %1176 = vmatpush1.xpose.msra.mxu0 0.0
        %1177 = vmatprep.subr.mxu0 0.0
        %1178 = vmatpush1.xpose.msra.mxu0 0.0
        %1179 = vmatprep.subr.mxu0 0.0
        %1180 = vmatpush1.xpose.msra.mxu0 0.0
        %1181 = vmatprep.subr.mxu0 0.0
        %1182 = vmatpush1.xpose.msra.mxu0 0.0
        %1183 = vmatprep.subr.mxu0 0.0
        %1184 = vmatpush1.xpose.msra.mxu0 0.0
        %1185 = vmatprep.subr.mxu0 0.0
        %1186 = vmatpush1.xpose.msra.mxu0 0.0
        %1187 = vmatprep.subr.mxu0 0.0
        %1188 = vmatpush1.xpose.msra.mxu0 0.0
        %1189 = vmatprep.subr.mxu0 0.0
        %1190 = vmatpush1.xpose.msra.mxu0 0.0
        %1191 = vmatprep.subr.mxu0 0.0
        %1192 = vmatpush1.xpose.msra.mxu0 0.0
        %1193 = vmatprep.subr.mxu0 0.0
        %1194 = vmatpush1.xpose.msra.mxu0 0.0
        %1195 = vmatprep.subr.mxu0 0.0
        %1196 = vmatpush1.xpose.msra.mxu0 0.0
        %1197 = vmatprep.mubr.f32.mxu0 0.0
        %1198 = vmatmul.mubr.f32.gmra.mrb[0].mxu0 %v1125
        %v1199 = vpop.f32.mrb[0].mxu0
        %v1200 = vadd.f32 0.0, %v1199
        %v1201 = vpop.f32.mrb[0].mxu0
        %1202 = vmatprep.mubr.f32.mxu0 0.0
        %1203 = vmatmul.mubr.f32.gmra.mrb[0].mxu0 %v1127
        %v1204 = vpop.f32.mrb[0].mxu0
        %v1205 = vadd.f32 0.0, %v1204
        %v1206 = vpop.f32.mrb[0].mxu0
        %1207 = vdwg.mxu0
        %v1208 = vsel %vm425, -inf, %v1200
        %v1209 = vsel %vm426, -inf, %v1205
        %v1210 = vsel %vm519, %v1208, -inf
        %1211 = vmax.xlane.f32.xlu0 %v1210
        %v1212 = vpop.xlane.xlu0 %1211
        %v1213 = vsel %vm519, %v1209, -inf
        %1214 = vmax.xlane.f32.xlu0 %v1213
        %v1215 = vpop.xlane.xlu0 %1214
        %v1216 = vsub.f32 %v1208, %v1212
        %v1217 = vsub.f32 %v1209, %v1215
        %v1218 = vmul.f32 %v1216, 1.442695
        %v1219 = vpow.pop %v1218
        %v1220 = vmul.f32 %v1217, 1.442695
        %v1221 = vpow.pop %v1220
        %v1222 = vsel %vm519, %v1219, 0.0
        %1223 = vadd.xlane.f32.xlu0 %v1222
        %v1224 = vpop.xlane.xlu0 %1223
        %v1225 = vsel %vm519, %v1221, 0.0
        %1226 = vadd.xlane.f32.xlu0 %v1225
        %v1227 = vpop.xlane.xlu0 %1226
        %1228 = vrot.lane.b32.xlu0 %v412, 64
        %v1229 = vpop.permute.xlu0 %1228
        %1230 = vrot.lane.b32.xlu0 %v417, 64
        %v1231 = vpop.permute.xlu0 %1230
        %v1235 = vsel %vm519, %v1219, 0
        %v1238 = vsel %vm519, %v1221, 0
        %1240 = vmatprep.subr.mxu0 0.0
        %1241 = vmatpush1.msra.mxu0 %v1229
        %1242 = vmatprep.subr.mxu0 0.0
        %1243 = vmatpush1.msra.mxu0 %v1231
        %1244 = vmatprep.subr.mxu0 0.0
        %1245 = vmatpush1.msra.mxu0 0.0
        %1246 = vmatprep.subr.mxu0 0.0
        %1247 = vmatpush1.msra.mxu0 0.0
        %1248 = vmatprep.subr.mxu0 0.0
        %1249 = vmatpush1.msra.mxu0 0.0
        %1250 = vmatprep.subr.mxu0 0.0
        %1251 = vmatpush1.msra.mxu0 0.0
        %1252 = vmatprep.subr.mxu0 0.0
        %1253 = vmatpush1.msra.mxu0 0.0
        %1254 = vmatprep.subr.mxu0 0.0
        %1255 = vmatpush1.msra.mxu0 0.0
        %1256 = vmatprep.subr.mxu0 0.0
        %1257 = vmatpush1.msra.mxu0 0.0
        %1258 = vmatprep.subr.mxu0 0.0
        %1259 = vmatpush1.msra.mxu0 0.0
        %1260 = vmatprep.subr.mxu0 0.0
        %1261 = vmatpush1.msra.mxu0 0.0
        %1262 = vmatprep.subr.mxu0 0.0
        %1263 = vmatpush1.msra.mxu0 0.0
        %1264 = vmatprep.subr.mxu0 0.0
        %1265 = vmatpush1.msra.mxu0 0.0
        %1266 = vmatprep.subr.mxu0 0.0
        %1267 = vmatpush1.msra.mxu0 0.0
        %1268 = vmatprep.subr.mxu0 0.0
        %1269 = vmatpush1.msra.mxu0 0.0
        %1270 = vmatprep.subr.mxu0 0.0
        %1271 = vmatpush1.msra.mxu0 0.0
        %1272 = vmatprep.subr.mxu0 0.0
        %1273 = vmatpush1.msra.mxu0 0.0
        %1274 = vmatprep.subr.mxu0 0.0
        %1275 = vmatpush1.msra.mxu0 0.0
        %1276 = vmatprep.subr.mxu0 0.0
        %1277 = vmatpush1.msra.mxu0 0.0
        %1278 = vmatprep.subr.mxu0 0.0
        %1279 = vmatpush1.msra.mxu0 0.0
        %1280 = vmatprep.subr.mxu0 0.0
        %1281 = vmatpush1.msra.mxu0 0.0
        %1282 = vmatprep.subr.mxu0 0.0
        %1283 = vmatpush1.msra.mxu0 0.0
        %1284 = vmatprep.subr.mxu0 0.0
        %1285 = vmatpush1.msra.mxu0 0.0
        %1286 = vmatprep.subr.mxu0 0.0
        %1287 = vmatpush1.msra.mxu0 0.0
        %1288 = vmatprep.subr.mxu0 0.0
        %1289 = vmatpush1.msra.mxu0 0.0
        %1290 = vmatprep.subr.mxu0 0.0
        %1291 = vmatpush1.msra.mxu0 0.0
        %1292 = vmatprep.subr.mxu0 0.0
        %1293 = vmatpush1.msra.mxu0 0.0
        %1294 = vmatprep.subr.mxu0 0.0
        %1295 = vmatpush1.msra.mxu0 0.0
        %1296 = vmatprep.subr.mxu0 0.0
        %1297 = vmatpush1.msra.mxu0 0.0
        %1298 = vmatprep.subr.mxu0 0.0
        %1299 = vmatpush1.msra.mxu0 0.0
        %1300 = vmatprep.subr.mxu0 0.0
        %1301 = vmatpush1.msra.mxu0 0.0
        %1302 = vmatprep.subr.mxu0 0.0
        %1303 = vmatpush1.msra.mxu0 0.0
        %1304 = vmatprep.mubr.f32.mxu0 0.0
        %1305 = vmatmul.mubr.f32.gmra.mrb[0].mxu0 %v1235
        %v1306 = vpop.f32.mrb[0].mxu0
        %v1307 = vadd.f32 0.0, %v1306
        %v1308 = vpop.f32.mrb[0].mxu0
        %1309 = vmatprep.mubr.f32.mxu0 0.0
        %1310 = vmatmul.mubr.f32.gmra.mrb[0].mxu0 %v1238
        %v1311 = vpop.f32.mrb[0].mxu0
        %v1312 = vadd.f32 0.0, %v1311
        %v1313 = vpop.f32.mrb[0].mxu0
        %1314 = vdwg.mxu0
        %v1315 = vrcp.pop %v1224
        %v1316 = vrcp.pop %v1227
        %v1317 = vmul.f32 %v1307, %v1315
        %v1318 = vmul.f32 %v1312, %v1316
        %1319 = vrot.lane.b32.xlu0 %v623, 64
        %v1320 = vpop.permute.xlu0 %1319
        %1321 = vrot.lane.b32.xlu0 %v624, 64
        %v1322 = vpop.permute.xlu0 %1321
        %1323 = vrot.lane.b32.xlu0 %v625, 64
        %v1324 = vpop.permute.xlu0 %1323
        %1325 = vrot.lane.b32.xlu0 %v626, 64
        %v1326 = vpop.permute.xlu0 %1325
        %1327 = vrot.lane.b32.xlu0 %v627, 64
        %v1328 = vpop.permute.xlu0 %1327
        %1329 = vrot.lane.b32.xlu0 %v628, 64
        %v1330 = vpop.permute.xlu0 %1329
        %1331 = vrot.lane.b32.xlu0 %v629, 64
        %v1332 = vpop.permute.xlu0 %1331
        %1333 = vrot.lane.b32.xlu0 %v630, 64
        %v1334 = vpop.permute.xlu0 %1333
        %1335 = vrot.lane.b32.xlu0 %v631, 64
        %v1336 = vpop.permute.xlu0 %1335
        %1337 = vrot.lane.b32.xlu0 %v632, 64
        %v1338 = vpop.permute.xlu0 %1337
        %1339 = vrot.lane.b32.xlu0 %v633, 64
        %v1340 = vpop.permute.xlu0 %1339
        %1341 = vrot.lane.b32.xlu0 %v634, 64
        %v1342 = vpop.permute.xlu0 %1341
        %1343 = vrot.lane.b32.xlu0 %v635, 64
        %v1344 = vpop.permute.xlu0 %1343
        %1345 = vrot.lane.b32.xlu0 %v636, 64
        %v1346 = vpop.permute.xlu0 %1345
        %1347 = vrot.lane.b32.xlu0 %v637, 64
        %v1348 = vpop.permute.xlu0 %1347
        %1349 = vrot.lane.b32.xlu0 %v638, 64
        %v1350 = vpop.permute.xlu0 %1349
        %v1352 = vsel %vm429, %v1317, 0
        %v1355 = vsel %vm429, %v1318, 0
        %v1357 = vsel %vm429, %v1320, 0
        %v1359 = vsel %vm429, %v1322, 0
        %v1361 = vsel %vm429, %v1324, 0
        %v1363 = vsel %vm429, %v1326, 0
        %v1365 = vsel %vm429, %v1328, 0
        %v1367 = vsel %vm429, %v1330, 0
        %v1369 = vsel %vm429, %v1332, 0
        %v1371 = vsel %vm429, %v1334, 0
        %v1373 = vsel %vm429, %v1336, 0
        %v1375 = vsel %vm429, %v1338, 0
        %v1377 = vsel %vm429, %v1340, 0
        %v1379 = vsel %vm429, %v1342, 0
        %v1381 = vsel %vm429, %v1344, 0
        %v1383 = vsel %vm429, %v1346, 0
        %v1385 = vsel %vm429, %v1348, 0
        %v1387 = vsel %vm429, %v1350, 0
        %1389 = vmatprep.subr.mxu0 0.0
        %1390 = vmatpush1.xpose.msra.mxu0 %v1357
        %1391 = vmatprep.subr.mxu0 0.0
        %1392 = vmatpush1.xpose.msra.mxu0 %v1359
        %1393 = vmatprep.subr.mxu0 0.0
        %1394 = vmatpush1.xpose.msra.mxu0 %v1361
        %1395 = vmatprep.subr.mxu0 0.0
        %1396 = vmatpush1.xpose.msra.mxu0 %v1363
        %1397 = vmatprep.subr.mxu0 0.0
        %1398 = vmatpush1.xpose.msra.mxu0 %v1365
        %1399 = vmatprep.subr.mxu0 0.0
        %1400 = vmatpush1.xpose.msra.mxu0 %v1367
        %1401 = vmatprep.subr.mxu0 0.0
        %1402 = vmatpush1.xpose.msra.mxu0 %v1369
        %1403 = vmatprep.subr.mxu0 0.0
        %1404 = vmatpush1.xpose.msra.mxu0 %v1371
        %1405 = vmatprep.subr.mxu0 0.0
        %1406 = vmatpush1.xpose.msra.mxu0 %v1373
        %1407 = vmatprep.subr.mxu0 0.0
        %1408 = vmatpush1.xpose.msra.mxu0 %v1375
        %1409 = vmatprep.subr.mxu0 0.0
        %1410 = vmatpush1.xpose.msra.mxu0 %v1377
        %1411 = vmatprep.subr.mxu0 0.0
        %1412 = vmatpush1.xpose.msra.mxu0 %v1379
        %1413 = vmatprep.subr.mxu0 0.0
        %1414 = vmatpush1.xpose.msra.mxu0 %v1381
        %1415 = vmatprep.subr.mxu0 0.0
        %1416 = vmatpush1.xpose.msra.mxu0 %v1383
        %1417 = vmatprep.subr.mxu0 0.0
        %1418 = vmatpush1.xpose.msra.mxu0 %v1385
        %1419 = vmatprep.subr.mxu0 0.0
        %1420 = vmatpush1.xpose.msra.mxu0 %v1387
        %1421 = vmatprep.subr.mxu0 0.0
        %1422 = vmatpush1.xpose.msra.mxu0 0.0
        %1423 = vmatprep.subr.mxu0 0.0
        %1424 = vmatpush1.xpose.msra.mxu0 0.0
        %1425 = vmatprep.subr.mxu0 0.0
        %1426 = vmatpush1.xpose.msra.mxu0 0.0
        %1427 = vmatprep.subr.mxu0 0.0
        %1428 = vmatpush1.xpose.msra.mxu0 0.0
        %1429 = vmatprep.subr.mxu0 0.0
        %1430 = vmatpush1.xpose.msra.mxu0 0.0
        %1431 = vmatprep.subr.mxu0 0.0
        %1432 = vmatpush1.xpose.msra.mxu0 0.0
        %1433 = vmatprep.subr.mxu0 0.0
        %1434 = vmatpush1.xpose.msra.mxu0 0.0
        %1435 = vmatprep.subr.mxu0 0.0
        %1436 = vmatpush1.xpose.msra.mxu0 0.0
        %1437 = vmatprep.subr.mxu0 0.0
        %1438 = vmatpush1.xpose.msra.mxu0 0.0
        %1439 = vmatprep.subr.mxu0 0.0
        %1440 = vmatpush1.xpose.msra.mxu0 0.0
        %1441 = vmatprep.subr.mxu0 0.0
        %1442 = vmatpush1.xpose.msra.mxu0 0.0
        %1443 = vmatprep.subr.mxu0 0.0
        %1444 = vmatpush1.xpose.msra.mxu0 0.0
        %1445 = vmatprep.subr.mxu0 0.0
        %1446 = vmatpush1.xpose.msra.mxu0 0.0
        %1447 = vmatprep.subr.mxu0 0.0
        %1448 = vmatpush1.xpose.msra.mxu0 0.0
        %1449 = vmatprep.subr.mxu0 0.0
        %1450 = vmatpush1.xpose.msra.mxu0 0.0
        %1451 = vmatprep.subr.mxu0 0.0
        %1452 = vmatpush1.xpose.msra.mxu0 0.0
        %1453 = vmatprep.mubr.f32.mxu0 0.0
        %1454 = vmatmul.mubr.f32.gmra.mrb[0].mxu0 %v1352
        %v1455 = vpop.f32.mrb[0].mxu0
        %v1456 = vadd.f32 0.0, %v1455
        %v1457 = vpop.f32.mrb[0].mxu0
        %1458 = vmatprep.mubr.f32.mxu0 0.0
        %1459 = vmatmul.mubr.f32.gmra.mrb[0].mxu0 %v1355
        %v1460 = vpop.f32.mrb[0].mxu0
        %v1461 = vadd.f32 0.0, %v1460
        %v1462 = vpop.f32.mrb[0].mxu0
        %1463 = vdwg.mxu0
        %v1464 = vadd.f32 %v1109, %v1456
        %v1465 = vadd.f32 %v1114, %v1461
        %1466 = vrot.lane.b32.xlu0 %v427, 32
        %v1467 = vpop.permute.xlu0 %1466
        %1468 = vrot.lane.b32.xlu0 %v428, 32
        %v1469 = vpop.permute.xlu0 %1468
        %1470 = vrot.lane.b32.xlu0 %v337, 32
        %v1471 = vpop.permute.xlu0 %1470
        %1472 = vrot.lane.b32.xlu0 %v343, 32
        %v1473 = vpop.permute.xlu0 %1472
        %v1474 = vsel %vm429, %v1467, 0
        %v1476 = vsel %vm429, %v1469, 0
        %v1478 = vsel %vm429, %v1471, 0
        %v1480 = vsel %vm429, %v1473, 0
        %1482 = vmatprep.subr.mxu0 0.0
        %1483 = vmatpush1.xpose.msra.mxu0 %v1478
        %1484 = vmatprep.subr.mxu0 0.0
        %1485 = vmatpush1.xpose.msra.mxu0 %v1480
        %1486 = vmatprep.subr.mxu0 0.0
        %1487 = vmatpush1.xpose.msra.mxu0 0.0
        %1488 = vmatprep.subr.mxu0 0.0
        %1489 = vmatpush1.xpose.msra.mxu0 0.0
        %1490 = vmatprep.subr.mxu0 0.0
        %1491 = vmatpush1.xpose.msra.mxu0 0.0
        %1492 = vmatprep.subr.mxu0 0.0
        %1493 = vmatpush1.xpose.msra.mxu0 0.0
        %1494 = vmatprep.subr.mxu0 0.0
        %1495 = vmatpush1.xpose.msra.mxu0 0.0
        %1496 = vmatprep.subr.mxu0 0.0
        %1497 = vmatpush1.xpose.msra.mxu0 0.0
        %1498 = vmatprep.subr.mxu0 0.0
        %1499 = vmatpush1.xpose.msra.mxu0 0.0
        %1500 = vmatprep.subr.mxu0 0.0
        %1501 = vmatpush1.xpose.msra.mxu0 0.0
        %1502 = vmatprep.subr.mxu0 0.0
        %1503 = vmatpush1.xpose.msra.mxu0 0.0
        %1504 = vmatprep.subr.mxu0 0.0
        %1505 = vmatpush1.xpose.msra.mxu0 0.0
        %1506 = vmatprep.subr.mxu0 0.0
        %1507 = vmatpush1.xpose.msra.mxu0 0.0
        %1508 = vmatprep.subr.mxu0 0.0
        %1509 = vmatpush1.xpose.msra.mxu0 0.0
        %1510 = vmatprep.subr.mxu0 0.0
        %1511 = vmatpush1.xpose.msra.mxu0 0.0
        %1512 = vmatprep.subr.mxu0 0.0
        %1513 = vmatpush1.xpose.msra.mxu0 0.0
        %1514 = vmatprep.subr.mxu0 0.0
        %1515 = vmatpush1.xpose.msra.mxu0 0.0
        %1516 = vmatprep.subr.mxu0 0.0
        %1517 = vmatpush1.xpose.msra.mxu0 0.0
        %1518 = vmatprep.subr.mxu0 0.0
        %1519 = vmatpush1.xpose.msra.mxu0 0.0
        %1520 = vmatprep.subr.mxu0 0.0
        %1521 = vmatpush1.xpose.msra.mxu0 0.0
        %1522 = vmatprep.subr.mxu0 0.0
        %1523 = vmatpush1.xpose.msra.mxu0 0.0
        %1524 = vmatprep.subr.mxu0 0.0
        %1525 = vmatpush1.xpose.msra.mxu0 0.0
        %1526 = vmatprep.subr.mxu0 0.0
        %1527 = vmatpush1.xpose.msra.mxu0 0.0
        %1528 = vmatprep.subr.mxu0 0.0
        %1529 = vmatpush1.xpose.msra.mxu0 0.0
        %1530 = vmatprep.subr.mxu0 0.0
        %1531 = vmatpush1.xpose.msra.mxu0 0.0
        %1532 = vmatprep.subr.mxu0 0.0
        %1533 = vmatpush1.xpose.msra.mxu0 0.0
        %1534 = vmatprep.subr.mxu0 0.0
        %1535 = vmatpush1.xpose.msra.mxu0 0.0
        %1536 = vmatprep.subr.mxu0 0.0
        %1537 = vmatpush1.xpose.msra.mxu0 0.0
        %1538 = vmatprep.subr.mxu0 0.0
        %1539 = vmatpush1.xpose.msra.mxu0 0.0
        %1540 = vmatprep.subr.mxu0 0.0
        %1541 = vmatpush1.xpose.msra.mxu0 0.0
        %1542 = vmatprep.subr.mxu0 0.0
        %1543 = vmatpush1.xpose.msra.mxu0 0.0
        %1544 = vmatprep.subr.mxu0 0.0
        %1545 = vmatpush1.xpose.msra.mxu0 0.0
        %1546 = vmatprep.mubr.f32.mxu0 0.0
        %1547 = vmatmul.mubr.f32.gmra.mrb[0].mxu0 %v1474
        %v1548 = vpop.f32.mrb[0].mxu0
        %v1549 = vadd.f32 0.0, %v1548
        %v1550 = vpop.f32.mrb[0].mxu0
        %1551 = vmatprep.mubr.f32.mxu0 0.0
        %1552 = vmatmul.mubr.f32.gmra.mrb[0].mxu0 %v1476
        %v1553 = vpop.f32.mrb[0].mxu0
        %v1554 = vadd.f32 0.0, %v1553
        %v1555 = vpop.f32.mrb[0].mxu0
        %1556 = vdwg.mxu0
        %v1557 = vsel %vm425, -inf, %v1549
        %v1558 = vsel %vm426, -inf, %v1554
        %v1559 = vsel %vm519, %v1557, -inf
        %1560 = vmax.xlane.f32.xlu0 %v1559
        %v1561 = vpop.xlane.xlu0 %1560
        %v1562 = vsel %vm519, %v1558, -inf
        %1563 = vmax.xlane.f32.xlu0 %v1562
        %v1564 = vpop.xlane.xlu0 %1563
        %v1565 = vsub.f32 %v1557, %v1561
        %v1566 = vsub.f32 %v1558, %v1564
        %v1567 = vmul.f32 %v1565, 1.442695
        %v1568 = vpow.pop %v1567
        %v1569 = vmul.f32 %v1566, 1.442695
        %v1570 = vpow.pop %v1569
        %v1571 = vsel %vm519, %v1568, 0.0
        %1572 = vadd.xlane.f32.xlu0 %v1571
        %v1573 = vpop.xlane.xlu0 %1572
        %v1574 = vsel %vm519, %v1570, 0.0
        %1575 = vadd.xlane.f32.xlu0 %v1574
        %v1576 = vpop.xlane.xlu0 %1575
        %1577 = vrot.lane.b32.xlu0 %v412, 32
        %v1578 = vpop.permute.xlu0 %1577
        %1579 = vrot.lane.b32.xlu0 %v417, 32
        %v1580 = vpop.permute.xlu0 %1579
        %v1584 = vsel %vm519, %v1568, 0
        %v1587 = vsel %vm519, %v1570, 0
        %1589 = vmatprep.subr.mxu0 0.0
        %1590 = vmatpush1.msra.mxu0 %v1578
        %1591 = vmatprep.subr.mxu0 0.0
        %1592 = vmatpush1.msra.mxu0 %v1580
        %1593 = vmatprep.subr.mxu0 0.0
        %1594 = vmatpush1.msra.mxu0 0.0
        %1595 = vmatprep.subr.mxu0 0.0
        %1596 = vmatpush1.msra.mxu0 0.0
        %1597 = vmatprep.subr.mxu0 0.0
        %1598 = vmatpush1.msra.mxu0 0.0
        %1599 = vmatprep.subr.mxu0 0.0
        %1600 = vmatpush1.msra.mxu0 0.0
        %1601 = vmatprep.subr.mxu0 0.0
        %1602 = vmatpush1.msra.mxu0 0.0
        %1603 = vmatprep.subr.mxu0 0.0
        %1604 = vmatpush1.msra.mxu0 0.0
        %1605 = vmatprep.subr.mxu0 0.0
        %1606 = vmatpush1.msra.mxu0 0.0
        %1607 = vmatprep.subr.mxu0 0.0
        %1608 = vmatpush1.msra.mxu0 0.0
        %1609 = vmatprep.subr.mxu0 0.0
        %1610 = vmatpush1.msra.mxu0 0.0
        %1611 = vmatprep.subr.mxu0 0.0
        %1612 = vmatpush1.msra.mxu0 0.0
        %1613 = vmatprep.subr.mxu0 0.0
        %1614 = vmatpush1.msra.mxu0 0.0
        %1615 = vmatprep.subr.mxu0 0.0
        %1616 = vmatpush1.msra.mxu0 0.0
        %1617 = vmatprep.subr.mxu0 0.0
        %1618 = vmatpush1.msra.mxu0 0.0
        %1619 = vmatprep.subr.mxu0 0.0
        %1620 = vmatpush1.msra.mxu0 0.0
        %1621 = vmatprep.subr.mxu0 0.0
        %1622 = vmatpush1.msra.mxu0 0.0
        %1623 = vmatprep.subr.mxu0 0.0
        %1624 = vmatpush1.msra.mxu0 0.0
        %1625 = vmatprep.subr.mxu0 0.0
        %1626 = vmatpush1.msra.mxu0 0.0
        %1627 = vmatprep.subr.mxu0 0.0
        %1628 = vmatpush1.msra.mxu0 0.0
        %1629 = vmatprep.subr.mxu0 0.0
        %1630 = vmatpush1.msra.mxu0 0.0
        %1631 = vmatprep.subr.mxu0 0.0
        %1632 = vmatpush1.msra.mxu0 0.0
        %1633 = vmatprep.subr.mxu0 0.0
        %1634 = vmatpush1.msra.mxu0 0.0
        %1635 = vmatprep.subr.mxu0 0.0
        %1636 = vmatpush1.msra.mxu0 0.0
        %1637 = vmatprep.subr.mxu0 0.0
        %1638 = vmatpush1.msra.mxu0 0.0
        %1639 = vmatprep.subr.mxu0 0.0
        %1640 = vmatpush1.msra.mxu0 0.0
        %1641 = vmatprep.subr.mxu0 0.0
        %1642 = vmatpush1.msra.mxu0 0.0
        %1643 = vmatprep.subr.mxu0 0.0
        %1644 = vmatpush1.msra.mxu0 0.0
        %1645 = vmatprep.subr.mxu0 0.0
        %1646 = vmatpush1.msra.mxu0 0.0
        %1647 = vmatprep.subr.mxu0 0.0
        %1648 = vmatpush1.msra.mxu0 0.0
        %1649 = vmatprep.subr.mxu0 0.0
        %1650 = vmatpush1.msra.mxu0 0.0
        %1651 = vmatprep.subr.mxu0 0.0
        %1652 = vmatpush1.msra.mxu0 0.0
        %1653 = vmatprep.mubr.f32.mxu0 0.0
        %1654 = vmatmul.mubr.f32.gmra.mrb[0].mxu0 %v1584
        %v1655 = vpop.f32.mrb[0].mxu0
        %v1656 = vadd.f32 0.0, %v1655
        %v1657 = vpop.f32.mrb[0].mxu0
        %1658 = vmatprep.mubr.f32.mxu0 0.0
        %1659 = vmatmul.mubr.f32.gmra.mrb[0].mxu0 %v1587
        %v1660 = vpop.f32.mrb[0].mxu0
        %v1661 = vadd.f32 0.0, %v1660
        %v1662 = vpop.f32.mrb[0].mxu0
        %1663 = vdwg.mxu0
        %v1664 = vrcp.pop %v1573
        %v1665 = vrcp.pop %v1576
        %v1666 = vmul.f32 %v1656, %v1664
        %v1667 = vmul.f32 %v1661, %v1665
        %1668 = vrot.lane.b32.xlu0 %v623, 32
        %v1669 = vpop.permute.xlu0 %1668
        %1670 = vrot.lane.b32.xlu0 %v624, 32
        %v1671 = vpop.permute.xlu0 %1670
        %1672 = vrot.lane.b32.xlu0 %v625, 32
        %v1673 = vpop.permute.xlu0 %1672
        %1674 = vrot.lane.b32.xlu0 %v626, 32
        %v1675 = vpop.permute.xlu0 %1674
        %1676 = vrot.lane.b32.xlu0 %v627, 32
        %v1677 = vpop.permute.xlu0 %1676
        %1678 = vrot.lane.b32.xlu0 %v628, 32
        %v1679 = vpop.permute.xlu0 %1678
        %1680 = vrot.lane.b32.xlu0 %v629, 32
        %v1681 = vpop.permute.xlu0 %1680
        %1682 = vrot.lane.b32.xlu0 %v630, 32
        %v1683 = vpop.permute.xlu0 %1682
        %1684 = vrot.lane.b32.xlu0 %v631, 32
        %v1685 = vpop.permute.xlu0 %1684
        %1686 = vrot.lane.b32.xlu0 %v632, 32
        %v1687 = vpop.permute.xlu0 %1686
        %1688 = vrot.lane.b32.xlu0 %v633, 32
        %v1689 = vpop.permute.xlu0 %1688
        %1690 = vrot.lane.b32.xlu0 %v634, 32
        %v1691 = vpop.permute.xlu0 %1690
        %1692 = vrot.lane.b32.xlu0 %v635, 32
        %v1693 = vpop.permute.xlu0 %1692
        %1694 = vrot.lane.b32.xlu0 %v636, 32
        %v1695 = vpop.permute.xlu0 %1694
        %1696 = vrot.lane.b32.xlu0 %v637, 32
        %v1697 = vpop.permute.xlu0 %1696
        %1698 = vrot.lane.b32.xlu0 %v638, 32
        %v1699 = vpop.permute.xlu0 %1698
        %v1701 = vsel %vm429, %v1666, 0
        %v1704 = vsel %vm429, %v1667, 0
        %v1706 = vsel %vm429, %v1669, 0
        %v1708 = vsel %vm429, %v1671, 0
        %v1710 = vsel %vm429, %v1673, 0
        %v1712 = vsel %vm429, %v1675, 0
        %v1714 = vsel %vm429, %v1677, 0
        %v1716 = vsel %vm429, %v1679, 0
        %v1718 = vsel %vm429, %v1681, 0
        %v1720 = vsel %vm429, %v1683, 0
        %v1722 = vsel %vm429, %v1685, 0
        %v1724 = vsel %vm429, %v1687, 0
        %v1726 = vsel %vm429, %v1689, 0
        %v1728 = vsel %vm429, %v1691, 0
        %v1730 = vsel %vm429, %v1693, 0
        %v1732 = vsel %vm429, %v1695, 0
        %v1734 = vsel %vm429, %v1697, 0
        %v1736 = vsel %vm429, %v1699, 0
        %1738 = vmatprep.subr.mxu0 0.0
        %1739 = vmatpush1.xpose.msra.mxu0 %v1706
        %1740 = vmatprep.subr.mxu0 0.0
        %1741 = vmatpush1.xpose.msra.mxu0 %v1708
        %1742 = vmatprep.subr.mxu0 0.0
        %1743 = vmatpush1.xpose.msra.mxu0 %v1710
        %1744 = vmatprep.subr.mxu0 0.0
        %1745 = vmatpush1.xpose.msra.mxu0 %v1712
        %1746 = vmatprep.subr.mxu0 0.0
        %1747 = vmatpush1.xpose.msra.mxu0 %v1714
        %1748 = vmatprep.subr.mxu0 0.0
        %1749 = vmatpush1.xpose.msra.mxu0 %v1716
        %1750 = vmatprep.subr.mxu0 0.0
        %1751 = vmatpush1.xpose.msra.mxu0 %v1718
        %1752 = vmatprep.subr.mxu0 0.0
        %1753 = vmatpush1.xpose.msra.mxu0 %v1720
        %1754 = vmatprep.subr.mxu0 0.0
        %1755 = vmatpush1.xpose.msra.mxu0 %v1722
        %1756 = vmatprep.subr.mxu0 0.0
        %1757 = vmatpush1.xpose.msra.mxu0 %v1724
        %1758 = vmatprep.subr.mxu0 0.0
        %1759 = vmatpush1.xpose.msra.mxu0 %v1726
        %1760 = vmatprep.subr.mxu0 0.0
        %1761 = vmatpush1.xpose.msra.mxu0 %v1728
        %1762 = vmatprep.subr.mxu0 0.0
        %1763 = vmatpush1.xpose.msra.mxu0 %v1730
        %1764 = vmatprep.subr.mxu0 0.0
        %1765 = vmatpush1.xpose.msra.mxu0 %v1732
        %1766 = vmatprep.subr.mxu0 0.0
        %1767 = vmatpush1.xpose.msra.mxu0 %v1734
        %1768 = vmatprep.subr.mxu0 0.0
        %1769 = vmatpush1.xpose.msra.mxu0 %v1736
        %1770 = vmatprep.subr.mxu0 0.0
        %1771 = vmatpush1.xpose.msra.mxu0 0.0
        %1772 = vmatprep.subr.mxu0 0.0
        %1773 = vmatpush1.xpose.msra.mxu0 0.0
        %1774 = vmatprep.subr.mxu0 0.0
        %1775 = vmatpush1.xpose.msra.mxu0 0.0
        %1776 = vmatprep.subr.mxu0 0.0
        %1777 = vmatpush1.xpose.msra.mxu0 0.0
        %1778 = vmatprep.subr.mxu0 0.0
        %1779 = vmatpush1.xpose.msra.mxu0 0.0
        %1780 = vmatprep.subr.mxu0 0.0
        %1781 = vmatpush1.xpose.msra.mxu0 0.0
        %1782 = vmatprep.subr.mxu0 0.0
        %1783 = vmatpush1.xpose.msra.mxu0 0.0
        %1784 = vmatprep.subr.mxu0 0.0
        %1785 = vmatpush1.xpose.msra.mxu0 0.0
        %1786 = vmatprep.subr.mxu0 0.0
        %1787 = vmatpush1.xpose.msra.mxu0 0.0
        %1788 = vmatprep.subr.mxu0 0.0
        %1789 = vmatpush1.xpose.msra.mxu0 0.0
        %1790 = vmatprep.subr.mxu0 0.0
        %1791 = vmatpush1.xpose.msra.mxu0 0.0
        %1792 = vmatprep.subr.mxu0 0.0
        %1793 = vmatpush1.xpose.msra.mxu0 0.0
        %1794 = vmatprep.subr.mxu0 0.0
        %1795 = vmatpush1.xpose.msra.mxu0 0.0
        %1796 = vmatprep.subr.mxu0 0.0
        %1797 = vmatpush1.xpose.msra.mxu0 0.0
        %1798 = vmatprep.subr.mxu0 0.0
        %1799 = vmatpush1.xpose.msra.mxu0 0.0
        %1800 = vmatprep.subr.mxu0 0.0
        %1801 = vmatpush1.xpose.msra.mxu0 0.0
        %1802 = vmatprep.mubr.f32.mxu0 0.0
        %1803 = vmatmul.mubr.f32.gmra.mrb[0].mxu0 %v1701
        %v1804 = vpop.f32.mrb[0].mxu0
        %v1805 = vadd.f32 0.0, %v1804
        %v1806 = vpop.f32.mrb[0].mxu0
        %1807 = vmatprep.mubr.f32.mxu0 0.0
        %1808 = vmatmul.mubr.f32.gmra.mrb[0].mxu0 %v1704
        %v1809 = vpop.f32.mrb[0].mxu0
        %v1810 = vadd.f32 0.0, %v1809
        %v1811 = vpop.f32.mrb[0].mxu0
        %1812 = vdwg.mxu0
        %v1813 = vadd.f32 %v1464, %v1805
        %v1814 = vadd.f32 %v1465, %v1810
        %1815 = vst [vmem:[%s217] sm:$0xff] %v1813
        %1816 = vst [vmem:[%s217 + $0x8] sm:$0xff] %v1814
        %s1817 = sand.u32 %s97, 1
        %s1818 = scalar_lea.sflag [#allocation4], %s1817
        %s1819 = sand.u32 %s97, 1
        %s1820 = smul.addr %s1819, 16
        %s1821 = scalar_lea.vmem [#allocation8], %s1820
        // Predicated region
        $region45: #{tpu_custom_call.1} parent=31 // pred_check
          %p1822 = pneg %p107
        $region46: #{tpu_custom_call.1} parent=31 // pred_check_branch
          %1824 = sbr.rel (%p1822) target = $region48
        $region47: #{tpu_custom_call.1} parent=31 // pred_region
          %s1826 = ssub.s32 256, 256
          %1827 = vsyncadd %s1818, %s1826
          %s1828 = smul.addr %s21, 2
          %s1829 = smul.addr %s1828, 128
          %s1830 = scalar_lea.hbm %s3, %s1829
          %s1831 = sshll.u32 %s1821, 4
          %s1832 = int_to_ptr.vmem [resolvable:$true] %s1831
          %1837 = dma.vmem_to_hbm [thread:$0]  %s1832, 256, %s1830, %s1818, 128, 128, 8
        $region48: #{tpu_custom_call.1} parent=31 // pred_fallthru
          _
      $region32: #{tpu_custom_call.1} parent=5 // pred_fallthru
        _
      %p1838 = scmp.le.s32.totalorder 2, %s16
      // Predicated region
      $region49: #{tpu_custom_call.1} parent=5 // pred_check
        %p1839 = pneg %p1838
      $region50: #{tpu_custom_call.1} parent=5 // pred_check_branch
        %1841 = sbr.rel (%p1839) target = $region52
      $region51: #{tpu_custom_call.1} parent=5 // pred_region
        %s1842 = ssub.s32 %s16, 2
        // Predicated region
        $region53: #{tpu_custom_call.1} parent=51 // pred_check
          %p1843 = pneg %p113
        $region54: #{tpu_custom_call.1} parent=51 // pred_check_branch
          %1845 = sbr.rel (%p1843) target = $region56
        $region55: #{tpu_custom_call.1} parent=51 // pred_region
          %s1846 = sand.u32 %s98, 1
          %s1847 = scalar_lea.sflag [#allocation4], %s1846
          %s1848 = sand.u32 %s98, 1
          %s1849 = smul.addr %s1848, 16
          %s1850 = scalar_lea.vmem [#allocation8], %s1849
          %1851 = dma.done %s1847, 256
        $region56: #{tpu_custom_call.1} parent=51 // pred_fallthru
          _
      $region52: #{tpu_custom_call.1} parent=5 // pred_fallthru
        _
    $region6: #{tpu_custom_call.1} parent=1 // loop_footer
      %s20 = sadd.s32 1, %s16
    $region7: #{tpu_custom_call.1} parent=1 // loop_footer_branch
      %15 = sbr.rel target = $region3
    $region8: #{tpu_custom_call.1} parent=1 // loop_exit
      _
    %1852 = vsyncpa [#allocation3], 1
    %s1853 = scalar_lea.sflag [#allocation3], 1
    %1854 = vsyncpa %s1853, 1
    %1855 = vsyncpa [#allocation6], 1
    %1856 = vsyncpa [#allocation4], 1
    %s1857 = scalar_lea.sflag [#allocation4], 1
    %1858 = vsyncpa %s1857, 1

</llo_original>
